<compile_context>
chip_gen: v7x
topology: tpu7x:2x2x1
jax: 0.10.0
libtpu: 0.0.40
codegen_flags: <defaults>
</compile_context>

<pallas_src>
import functools

import jax
import jax.numpy as jnp
from jax.experimental import pallas as pl
from jax.experimental.pallas import tpu as pltpu

LANE = 128          # TPU vreg lane width (feature dims padded to this)
SUBLANE_BF16 = 16   # bf16 sublane packing (node dim padded to this at small N)


def _round_up(v, m):
    return ((v + m - 1) // m) * m


def _full_spec(shape):
    # Whole (padded) array as a single VMEM block; no grid.
    return pl.BlockSpec(shape, lambda: (0,) * len(shape))


def _vmem_cap_bytes():
    """~80% of the physical per-TensorCore VMEM (128 MiB v5e/v6e, 64 MiB v7x)."""
    phys = 64 << 20  # conservative fallback = v7x per-TC VMEM
    try:
        info = pltpu.get_tpu_info()
        cap = getattr(info, "vmem_capacity_bytes", None)
        if cap:
            phys = int(cap)
    except Exception:
        pass
    return int(phys * 0.8)


# --------------------------------------------------------------------------
# Fused Pallas kernel: entire IncepGCNBlock forward
# --------------------------------------------------------------------------
def _incep_gcn_kernel(a_ref, x_ref, wf_ref, bf_ref,
                      w21_ref, b21_ref, w31_ref, b31_ref,
                      w32_ref, b32_ref,
                      wl1_ref, wl2_ref, wl3_ref, bl_ref,
                      o_ref, *, f_pad):
    f32, bf16 = jnp.float32, jnp.bfloat16
    # A_hat stays resident in VMEM and is reused by all 4 aggregations.
    a = a_ref[...]                                            # (Np, Np) bf16

    def agg(xw_bf16):                                         # A_hat @ (·) on MXU
        return jnp.dot(a, xw_bf16, preferred_element_type=f32)

    def epilogue(v, b_ref, relu, out_dtype=bf16):             # bias(+ReLU)+cast
        v = v + b_ref[...]
        if relu:
            v = jnp.maximum(v, 0.0)
        return v.astype(out_dtype)

    # ---- Layer 1 of all three branches: aggregation-first + batched projection.
    # A @ (X @ [W1|W2|W3]) == (A @ X) @ [W1|W2|W3]; AX has lane width Fin (128)
    # instead of 3*Fp (384) and is shared by the three branches.
    ax = agg(x_ref[...]).astype(bf16)                         # (Np, Fin_p)
    h_first = epilogue(jnp.dot(ax, wf_ref[...], preferred_element_type=f32),
                       bf_ref, relu=True)                     # (Np, 3*Fp) bf16
    h1 = h_first[:, 0 * f_pad:1 * f_pad]                      # branch 1 done
    h2a = h_first[:, 1 * f_pad:2 * f_pad]                     # branch 2 after conv 1
    h3a = h_first[:, 2 * f_pad:3 * f_pad]                     # branch 3 after conv 1

    # ---- Depth-2 convs of branches 2 and 3: ONE batched 2*Fp-lane aggregation.
    xw2 = jnp.dot(h2a, w21_ref[...], preferred_element_type=f32).astype(bf16)
    xw3 = jnp.dot(h3a, w31_ref[...], preferred_element_type=f32).astype(bf16)
    u = agg(jnp.concatenate([xw2, xw3], axis=1))              # (Np, 2*Fp) f32
    h2 = epilogue(u[:, :f_pad], b21_ref, relu=True)           # branch 2 done
    h3b = epilogue(u[:, f_pad:], b31_ref, relu=True)

    # ---- Depth-3 conv of branch 3.
    xw33 = jnp.dot(h3b, w32_ref[...], preferred_element_type=f32).astype(bf16)
    h3 = epilogue(agg(xw33), b32_ref, relu=True)              # branch 3 done

    # ---- Last conv: project-first (input 3*Fp > output Fp); no concat — split
    # W_last into three Fp x Fp blocks and accumulate in f32.
    xw_last = (jnp.dot(h1, wl1_ref[...], preferred_element_type=f32)
               + jnp.dot(h2, wl2_ref[...], preferred_element_type=f32)
               + jnp.dot(h3, wl3_ref[...], preferred_element_type=f32))
    o_ref[...] = epilogue(agg(xw_last.astype(bf16)), bl_ref,
                          relu=False, out_dtype=o_ref.dtype)


def incep_gcn_block_apply(a_hat_pad, x_pad, packed, *, num_nodes, output_dim):
    """One fused pallas_call for the whole block; returns [num_nodes, output_dim]."""
    n_pad = a_hat_pad.shape[0]
    f_in_pad = x_pad.shape[1]
    f_pad = packed["w_l1"].shape[1]

    operands = (a_hat_pad, x_pad,
                packed["w_first"], packed["b_first"],
                packed["w_b2_1"], packed["b_b2_1"],
                packed["w_b3_1"], packed["b_b3_1"],
                packed["w_b3_2"], packed["b_b3_2"],
                packed["w_l1"], packed["w_l2"], packed["w_l3"], packed["b_last"])

    # Advisory cost estimate: 4 (N,N) aggregations + 6 projections.
    flops = int(2 * n_pad * n_pad * (f_in_pad + 4 * f_pad)
                + 2 * n_pad * (3 * f_in_pad * f_pad + 6 * f_pad * f_pad))
    operand_bytes = sum(int(o.size) * o.dtype.itemsize for o in operands)
    out_bytes = n_pad * f_pad * 4
    bytes_accessed = operand_bytes + out_bytes

    # VMEM: single-buffered (no grid) resident set = operands + output + live
    # intermediates; cap at ~80% of the chip's physical VMEM (no 32 MiB clamp).
    inter_bytes = 8 * n_pad * 3 * f_pad * 4
    vmem_est = operand_bytes + out_bytes + inter_bytes
    vmem_limit = int(min(max(2 * vmem_est, 16 << 20), _vmem_cap_bytes()))

    out_pad = pl.pallas_call(
        functools.partial(_incep_gcn_kernel, f_pad=f_pad),
        out_shape=jax.ShapeDtypeStruct((n_pad, f_pad), jnp.float32),
        in_specs=[_full_spec(o.shape) for o in operands],
        out_specs=_full_spec((n_pad, f_pad)),
        cost_estimate=pl.CostEstimate(flops=flops, transcendentals=0,
                                      bytes_accessed=int(bytes_accessed)),
        compiler_params=pltpu.CompilerParams(vmem_limit_bytes=vmem_limit),
    )(*operands)
    return out_pad[:num_nodes, :output_dim]


# --------------------------------------------------------------------------
# Glue: normalized adjacency, parameters, padding / packing
# --------------------------------------------------------------------------
def normalized_adjacency(edge_index, num_nodes):
    """Dense A_hat = D^-1/2 (A + I) D^-1/2. Duplicate edges are summed
    (message-sum semantics); self-loops added only where missing."""
    src, dst = edge_index[0], edge_index[1]
    adj = jnp.zeros((num_nodes, num_nodes), jnp.float32)
    adj = adj.at[dst, src].add(1.0)
    diag = jnp.diagonal(adj)
    adj = adj + jnp.diag(jnp.where(diag > 0.0, 0.0, 1.0))
    deg = jnp.sum(adj, axis=1)
    d_inv_sqrt = jnp.where(deg > 0, 1.0 / jnp.sqrt(deg), 0.0)
    return d_inv_sqrt[:, None] * adj * d_inv_sqrt[None, :]


def init_gcn_params(key, in_dim, out_dim):
    # Glorot-uniform weight, zero bias (matches PyG GCNConv init scheme).
    limit = float(jnp.sqrt(6.0 / (in_dim + out_dim)))
    w = jax.random.uniform(key, (in_dim, out_dim), jnp.float32, -limit, limit)
    b = jnp.zeros((out_dim,), jnp.float32)
    return w, b


def init_incep_gcn_block(key, input_dim, output_dim):
    keys = jax.random.split(key, 7)
    return {
        "branch_1": [init_gcn_params(keys[0], input_dim, output_dim)],
        "branch_2": [init_gcn_params(keys[1], input_dim, output_dim),
                     init_gcn_params(keys[2], output_dim, output_dim)],
        "branch_3": [init_gcn_params(keys[3], input_dim, output_dim),
                     init_gcn_params(keys[4], output_dim, output_dim),
                     init_gcn_params(keys[5], output_dim, output_dim)],
        "last_conv": init_gcn_params(keys[6], output_dim * 3, output_dim),
    }


def pack_params(params, input_dim, output_dim, f_in_pad, f_pad):
    """Zero-pad weights/biases to lane-dense (multiple-of-128) shapes, batch the
    three first-layer weights into [f_in_pad, 3*f_pad], and split the last-conv
    weight into three [f_pad, f_pad] blocks (concat-free final projection)."""
    def pad_w(w, rows, cols):
        return jnp.zeros((rows, cols), jnp.float32).at[:w.shape[0], :w.shape[1]].set(w)

    def pad_b(b, cols):
        return jnp.zeros((1, cols), jnp.float32).at[0, :b.shape[0]].set(b)

    firsts = [params["branch_1"][0], params["branch_2"][0], params["branch_3"][0]]
    w_first = jnp.zeros((f_in_pad, 3 * f_pad), jnp.float32)
    b_first = jnp.zeros((1, 3 * f_pad), jnp.float32)
    for i, (w, b) in enumerate(firsts):
        w_first = w_first.at[:input_dim, i * f_pad:i * f_pad + output_dim].set(w)
        b_first = b_first.at[0, i * f_pad:i * f_pad + output_dim].set(b)

    w21, b21 = params["branch_2"][1]
    w31, b31 = params["branch_3"][1]
    w32, b32 = params["branch_3"][2]
    wl, bl = params["last_conv"]
    wl_blocks = [pad_w(wl[i * output_dim:(i + 1) * output_dim, :], f_pad, f_pad)
                 for i in range(3)]

    bf16 = jnp.bfloat16
    return {
        "w_first": w_first.astype(bf16), "b_first": b_first,
        "w_b2_1": pad_w(w21, f_pad, f_pad).astype(bf16), "b_b2_1": pad_b(b21, f_pad),
        "w_b3_1": pad_w(w31, f_pad, f_pad).astype(bf16), "b_b3_1": pad_b(b31, f_pad),
        "w_b3_2": pad_w(w32, f_pad, f_pad).astype(bf16), "b_b3_2": pad_b(b32, f_pad),
        "w_l1": wl_blocks[0].astype(bf16), "w_l2": wl_blocks[1].astype(bf16),
        "w_l3": wl_blocks[2].astype(bf16), "b_last": pad_b(bl, f_pad),
    }


def prepare_inputs(x, edge_index, params, input_dim, output_dim):
    """Hoisted one-time prep: A_hat build + normalization + padding + packing."""
    num_nodes = x.shape[0]
    # Node (sublane) dim: only 16-align at small N (avoids 16x dead MXU work on
    # zero rows); large graphs go to the MXU-friendly 128 tile.
    if num_nodes >= LANE:
        n_pad = _round_up(num_nodes, LANE)
    else:
        n_pad = _round_up(num_nodes, SUBLANE_BF16)
    f_in_pad = _round_up(input_dim, LANE)
    f_pad = _round_up(output_dim, LANE)

    a_hat = normalized_adjacency(edge_index, num_nodes)
    # IMPORTANT: A_hat padding must stay ZERO (never identity) so the relu(bias)
    # garbage on padded node rows never leaks into real nodes.
    a_hat_pad = (jnp.zeros((n_pad, n_pad), jnp.float32)
                 .at[:num_nodes, :num_nodes].set(a_hat).astype(jnp.bfloat16))
    x_pad = (jnp.zeros((n_pad, f_in_pad), jnp.float32)
             .at[:num_nodes, :input_dim].set(x).astype(jnp.bfloat16))

    packed = pack_params(params, input_dim, output_dim, f_in_pad, f_pad)
    return a_hat_pad, x_pad, packed


# --------------------------------------------------------------------------
# Pure-JAX f32 reference (for tolerance validation of the bf16 kernel)
# --------------------------------------------------------------------------
def incep_gcn_block_ref(x, edge_index, params):
    a_hat = normalized_adjacency(edge_index, x.shape[0])

    def gcn(h, w, b, relu):
        out = a_hat @ (h @ w) + b
        return jnp.maximum(out, 0.0) if relu else out

    outs = []
    for name in ("branch_1", "branch_2", "branch_3"):
        h = x
        for (w, b) in params[name]:
            h = gcn(h, w, b, relu=True)
        outs.append(h)
    cat = jnp.concatenate(outs, axis=1)
    wl, bl = params["last_conv"]
    return gcn(cat, wl, bl, relu=False)


# --------------------------------------------------------------------------
# Main
# --------------------------------------------------------------------------
if __name__ == "__main__":
    key = jax.random.PRNGKey(0)
    k_x, k_e, k_p = jax.random.split(key, 3)

    num_nodes = 8
    input_dim = 16
    output_dim = 16
    dropout = 0.0  # -> nn.Dropout is None / identity, matching the module

    # Node features [N, input_dim]
    x = jax.random.normal(k_x, (num_nodes, input_dim), jnp.float32)

    # Deterministic small undirected graph: edge_index [2, E]
    num_rand_edges = 12
    src = jax.random.randint(k_e, (num_rand_edges,), 0, num_nodes)
    dst = (src + 1 + jnp.arange(num_rand_edges) % (num_nodes - 1)) % num_nodes
    edge_index = jnp.stack(
        [jnp.concatenate([src, dst]), jnp.concatenate([dst, src])], axis=0
    ).astype(jnp.int32)  # both directions -> symmetric graph, E = 24

    params = init_incep_gcn_block(k_p, input_dim, output_dim)

    # A_hat / padding / weight packing computed ONCE, outside the hot path.
    a_hat_pad, x_pad, packed = prepare_inputs(x, edge_index, params,
                                              input_dim, output_dim)

    apply_fn = jax.jit(functools.partial(
        incep_gcn_block_apply, num_nodes=num_nodes, output_dim=output_dim))

    out = jax.block_until_ready(apply_fn(a_hat_pad, x_pad, packed))

    assert out.shape == (num_nodes, output_dim), out.shape
    assert bool(jnp.all(jnp.isfinite(out)))

    # bf16-MXU kernel vs all-f32 reference: tolerance check, not exact match.
    ref = incep_gcn_block_ref(x, edge_index, params)
    assert bool(jnp.allclose(out, ref, rtol=1e-1, atol=1e-1)), \
        float(jnp.max(jnp.abs(out - ref)))

    print("KERNEL_OK")
</pallas_src>

<mosaic_0001>
module attributes {stable_mosaic.version = 11 : i64} {
  func.func @_incep_gcn_kernel(%arg0: memref<16x16xbf16, #tpu.memory_space<vmem>>, %arg1: memref<16x128xbf16, #tpu.memory_space<vmem>>, %arg2: memref<128x384xbf16, #tpu.memory_space<vmem>>, %arg3: memref<1x384xf32, #tpu.memory_space<vmem>>, %arg4: memref<128x128xbf16, #tpu.memory_space<vmem>>, %arg5: memref<1x128xf32, #tpu.memory_space<vmem>>, %arg6: memref<128x128xbf16, #tpu.memory_space<vmem>>, %arg7: memref<1x128xf32, #tpu.memory_space<vmem>>, %arg8: memref<128x128xbf16, #tpu.memory_space<vmem>>, %arg9: memref<1x128xf32, #tpu.memory_space<vmem>>, %arg10: memref<128x128xbf16, #tpu.memory_space<vmem>>, %arg11: memref<128x128xbf16, #tpu.memory_space<vmem>>, %arg12: memref<128x128xbf16, #tpu.memory_space<vmem>>, %arg13: memref<1x128xf32, #tpu.memory_space<vmem>>, %arg14: memref<16x128xf32, #tpu.memory_space<vmem>>) attributes {dimension_semantics = [], scalar_prefetch = 0 : i64, scratch_operands = 0 : i64, tpu.core_type = #tpu.core_type<tc>} {
    %c0 = arith.constant 0 : index
    %c0_0 = arith.constant 0 : index
    %0 = vector.load %arg0[%c0, %c0_0] : memref<16x16xbf16, #tpu.memory_space<vmem>>, vector<16x16xbf16>
    %c0_1 = arith.constant 0 : index
    %c0_2 = arith.constant 0 : index
    %1 = vector.load %arg1[%c0_1, %c0_2] : memref<16x128xbf16, #tpu.memory_space<vmem>>, vector<16x128xbf16>
    %cst = arith.constant dense<0.000000e+00> : vector<16x128xf32>
    %2 = tpu.matmul %0, %1, %cst {dimension_numbers = #tpu.dot_dimension_numbers<[1], [0], [0], [1], [0, 0, 1, 1], [], []>} : vector<16x16xbf16>, vector<16x128xbf16>, vector<16x128xf32> -> vector<16x128xf32>
    %3 = arith.truncf %2 : vector<16x128xf32> to vector<16x128xbf16>
    %c0_3 = arith.constant 0 : index
    %c0_4 = arith.constant 0 : index
    %4 = vector.load %arg2[%c0_3, %c0_4] : memref<128x384xbf16, #tpu.memory_space<vmem>>, vector<128x384xbf16>
    %cst_5 = arith.constant dense<0.000000e+00> : vector<16x384xf32>
    %5 = tpu.matmul %3, %4, %cst_5 {dimension_numbers = #tpu.dot_dimension_numbers<[1], [0], [0], [1], [0, 0, 1, 1], [], []>} : vector<16x128xbf16>, vector<128x384xbf16>, vector<16x384xf32> -> vector<16x384xf32>
    %c0_6 = arith.constant 0 : index
    %c0_7 = arith.constant 0 : index
    %6 = vector.load %arg3[%c0_6, %c0_7] : memref<1x384xf32, #tpu.memory_space<vmem>>, vector<1x384xf32>
    %7 = vector.broadcast %6 : vector<1x384xf32> to vector<16x384xf32>
    %8 = arith.addf %5, %7 : vector<16x384xf32>
    %cst_8 = arith.constant 0.000000e+00 : f32
    %9 = vector.broadcast %cst_8 : f32 to vector<16x384xf32>
    %10 = arith.maximumf %8, %9 : vector<16x384xf32>
    %11 = arith.truncf %10 : vector<16x384xf32> to vector<16x384xbf16>
    %12 = vector.extract_strided_slice %11 {offsets = [0, 0], sizes = [16, 128], strides = [1, 1]} : vector<16x384xbf16> to vector<16x128xbf16>
    %13 = vector.extract_strided_slice %11 {offsets = [0, 128], sizes = [16, 128], strides = [1, 1]} : vector<16x384xbf16> to vector<16x128xbf16>
    %14 = vector.extract_strided_slice %11 {offsets = [0, 256], sizes = [16, 128], strides = [1, 1]} : vector<16x384xbf16> to vector<16x128xbf16>
    %c0_9 = arith.constant 0 : index
    %c0_10 = arith.constant 0 : index
    %15 = vector.load %arg4[%c0_9, %c0_10] : memref<128x128xbf16, #tpu.memory_space<vmem>>, vector<128x128xbf16>
    %cst_11 = arith.constant dense<0.000000e+00> : vector<16x128xf32>
    %16 = tpu.matmul %13, %15, %cst_11 {dimension_numbers = #tpu.dot_dimension_numbers<[1], [0], [0], [1], [0, 0, 1, 1], [], []>} : vector<16x128xbf16>, vector<128x128xbf16>, vector<16x128xf32> -> vector<16x128xf32>
    %17 = arith.truncf %16 : vector<16x128xf32> to vector<16x128xbf16>
    %c0_12 = arith.constant 0 : index
    %c0_13 = arith.constant 0 : index
    %18 = vector.load %arg6[%c0_12, %c0_13] : memref<128x128xbf16, #tpu.memory_space<vmem>>, vector<128x128xbf16>
    %cst_14 = arith.constant dense<0.000000e+00> : vector<16x128xf32>
    %19 = tpu.matmul %14, %18, %cst_14 {dimension_numbers = #tpu.dot_dimension_numbers<[1], [0], [0], [1], [0, 0, 1, 1], [], []>} : vector<16x128xbf16>, vector<128x128xbf16>, vector<16x128xf32> -> vector<16x128xf32>
    %20 = arith.truncf %19 : vector<16x128xf32> to vector<16x128xbf16>
    %21 = tpu.concatenate %17, %20 in 1 : vector<16x128xbf16>, vector<16x128xbf16> -> vector<16x256xbf16>
    %cst_15 = arith.constant dense<0.000000e+00> : vector<16x256xf32>
    %22 = tpu.matmul %0, %21, %cst_15 {dimension_numbers = #tpu.dot_dimension_numbers<[1], [0], [0], [1], [0, 0, 1, 1], [], []>} : vector<16x16xbf16>, vector<16x256xbf16>, vector<16x256xf32> -> vector<16x256xf32>
    %23 = vector.extract_strided_slice %22 {offsets = [0, 0], sizes = [16, 128], strides = [1, 1]} : vector<16x256xf32> to vector<16x128xf32>
    %c0_16 = arith.constant 0 : index
    %c0_17 = arith.constant 0 : index
    %24 = vector.load %arg5[%c0_16, %c0_17] : memref<1x128xf32, #tpu.memory_space<vmem>>, vector<1x128xf32>
    %25 = vector.broadcast %24 : vector<1x128xf32> to vector<16x128xf32>
    %26 = arith.addf %23, %25 : vector<16x128xf32>
    %cst_18 = arith.constant 0.000000e+00 : f32
    %27 = vector.broadcast %cst_18 : f32 to vector<16x128xf32>
    %28 = arith.maximumf %26, %27 : vector<16x128xf32>
    %29 = arith.truncf %28 : vector<16x128xf32> to vector<16x128xbf16>
    %30 = vector.extract_strided_slice %22 {offsets = [0, 128], sizes = [16, 128], strides = [1, 1]} : vector<16x256xf32> to vector<16x128xf32>
    %c0_19 = arith.constant 0 : index
    %c0_20 = arith.constant 0 : index
    %31 = vector.load %arg7[%c0_19, %c0_20] : memref<1x128xf32, #tpu.memory_space<vmem>>, vector<1x128xf32>
    %32 = vector.broadcast %31 : vector<1x128xf32> to vector<16x128xf32>
    %33 = arith.addf %30, %32 : vector<16x128xf32>
    %cst_21 = arith.constant 0.000000e+00 : f32
    %34 = vector.broadcast %cst_21 : f32 to vector<16x128xf32>
    %35 = arith.maximumf %33, %34 : vector<16x128xf32>
    %36 = arith.truncf %35 : vector<16x128xf32> to vector<16x128xbf16>
    %c0_22 = arith.constant 0 : index
    %c0_23 = arith.constant 0 : index
    %37 = vector.load %arg8[%c0_22, %c0_23] : memref<128x128xbf16, #tpu.memory_space<vmem>>, vector<128x128xbf16>
    %cst_24 = arith.constant dense<0.000000e+00> : vector<16x128xf32>
    %38 = tpu.matmul %36, %37, %cst_24 {dimension_numbers = #tpu.dot_dimension_numbers<[1], [0], [0], [1], [0, 0, 1, 1], [], []>} : vector<16x128xbf16>, vector<128x128xbf16>, vector<16x128xf32> -> vector<16x128xf32>
    %39 = arith.truncf %38 : vector<16x128xf32> to vector<16x128xbf16>
    %cst_25 = arith.constant dense<0.000000e+00> : vector<16x128xf32>
    %40 = tpu.matmul %0, %39, %cst_25 {dimension_numbers = #tpu.dot_dimension_numbers<[1], [0], [0], [1], [0, 0, 1, 1], [], []>} : vector<16x16xbf16>, vector<16x128xbf16>, vector<16x128xf32> -> vector<16x128xf32>
    %c0_26 = arith.constant 0 : index
    %c0_27 = arith.constant 0 : index
    %41 = vector.load %arg9[%c0_26, %c0_27] : memref<1x128xf32, #tpu.memory_space<vmem>>, vector<1x128xf32>
    %42 = vector.broadcast %41 : vector<1x128xf32> to vector<16x128xf32>
    %43 = arith.addf %40, %42 : vector<16x128xf32>
    %cst_28 = arith.constant 0.000000e+00 : f32
    %44 = vector.broadcast %cst_28 : f32 to vector<16x128xf32>
    %45 = arith.maximumf %43, %44 : vector<16x128xf32>
    %46 = arith.truncf %45 : vector<16x128xf32> to vector<16x128xbf16>
    %c0_29 = arith.constant 0 : index
    %c0_30 = arith.constant 0 : index
    %47 = vector.load %arg10[%c0_29, %c0_30] : memref<128x128xbf16, #tpu.memory_space<vmem>>, vector<128x128xbf16>
    %cst_31 = arith.constant dense<0.000000e+00> : vector<16x128xf32>
    %48 = tpu.matmul %12, %47, %cst_31 {dimension_numbers = #tpu.dot_dimension_numbers<[1], [0], [0], [1], [0, 0, 1, 1], [], []>} : vector<16x128xbf16>, vector<128x128xbf16>, vector<16x128xf32> -> vector<16x128xf32>
    %c0_32 = arith.constant 0 : index
    %c0_33 = arith.constant 0 : index
    %49 = vector.load %arg11[%c0_32, %c0_33] : memref<128x128xbf16, #tpu.memory_space<vmem>>, vector<128x128xbf16>
    %cst_34 = arith.constant dense<0.000000e+00> : vector<16x128xf32>
    %50 = tpu.matmul %29, %49, %cst_34 {dimension_numbers = #tpu.dot_dimension_numbers<[1], [0], [0], [1], [0, 0, 1, 1], [], []>} : vector<16x128xbf16>, vector<128x128xbf16>, vector<16x128xf32> -> vector<16x128xf32>
    %51 = arith.addf %48, %50 : vector<16x128xf32>
    %c0_35 = arith.constant 0 : index
    %c0_36 = arith.constant 0 : index
    %52 = vector.load %arg12[%c0_35, %c0_36] : memref<128x128xbf16, #tpu.memory_space<vmem>>, vector<128x128xbf16>
    %cst_37 = arith.constant dense<0.000000e+00> : vector<16x128xf32>
    %53 = tpu.matmul %46, %52, %cst_37 {dimension_numbers = #tpu.dot_dimension_numbers<[1], [0], [0], [1], [0, 0, 1, 1], [], []>} : vector<16x128xbf16>, vector<128x128xbf16>, vector<16x128xf32> -> vector<16x128xf32>
    %54 = arith.addf %51, %53 : vector<16x128xf32>
    %55 = arith.truncf %54 : vector<16x128xf32> to vector<16x128xbf16>
    %cst_38 = arith.constant dense<0.000000e+00> : vector<16x128xf32>
    %56 = tpu.matmul %0, %55, %cst_38 {dimension_numbers = #tpu.dot_dimension_numbers<[1], [0], [0], [1], [0, 0, 1, 1], [], []>} : vector<16x16xbf16>, vector<16x128xbf16>, vector<16x128xf32> -> vector<16x128xf32>
    %c0_39 = arith.constant 0 : index
    %c0_40 = arith.constant 0 : index
    %57 = vector.load %arg13[%c0_39, %c0_40] : memref<1x128xf32, #tpu.memory_space<vmem>>, vector<1x128xf32>
    %58 = vector.broadcast %57 : vector<1x128xf32> to vector<16x128xf32>
    %59 = arith.addf %56, %58 : vector<16x128xf32>
    %c0_41 = arith.constant 0 : index
    %c0_42 = arith.constant 0 : index
    %60 = vector.load %arg14[%c0_41, %c0_42] : memref<16x128xf32, #tpu.memory_space<vmem>>, vector<16x128xf32>
    tpu.vector_store %arg14[%c0_41, %c0_42], %59 {strides = array<i32>} : memref<16x128xf32, #tpu.memory_space<vmem>>, vector<16x128xf32>,
    return
  }
}

</mosaic_0001>

<llo_original>
// kernel: incep_gcn_block_apply.1
$region0: #{incep_gcn_block_apply.1}
  #allocation0 [shape = 'u32[]', space=smem, size = 0x4, offset = 0x4, fixed_abs, tag = 'smem constant byte address 0x4 - core index']
  #allocation1 [shape = 'u32[144,128]{1,0:T(1,128)}', space=vmem, size = 0x12000, scoped, tag = 'internal scratch']
  %s0 = inlined_call_operand.hbm [shape: bf16[16,16], index: 0, kind: input, shape index: {}]
  %s1 = inlined_call_operand.hbm [shape: bf16[16,128], index: 1, kind: input, shape index: {}]
  %s2 = inlined_call_operand.hbm [shape: bf16[128,384], index: 2, kind: input, shape index: {}]
  %s3 = inlined_call_operand.vmem [shape: f32[1,384], index: 3, kind: input, shape index: {}]
  %s4 = inlined_call_operand.hbm [shape: bf16[128,128], index: 4, kind: input, shape index: {}]
  %s5 = inlined_call_operand.vmem [shape: f32[1,128], index: 5, kind: input, shape index: {}]
  %s6 = inlined_call_operand.hbm [shape: bf16[128,128], index: 6, kind: input, shape index: {}]
  %s7 = inlined_call_operand.vmem [shape: f32[1,128], index: 7, kind: input, shape index: {}]
  %s8 = inlined_call_operand.hbm [shape: bf16[128,128], index: 8, kind: input, shape index: {}]
  %s9 = inlined_call_operand.vmem [shape: f32[1,128], index: 9, kind: input, shape index: {}]
  %s10 = inlined_call_operand.hbm [shape: bf16[128,128], index: 10, kind: input, shape index: {}]
  %s11 = inlined_call_operand.hbm [shape: bf16[128,128], index: 11, kind: input, shape index: {}]
  %s12 = inlined_call_operand.hbm [shape: bf16[128,128], index: 12, kind: input, shape index: {}]
  %s13 = inlined_call_operand.vmem [shape: f32[1,128], index: 13, kind: input, shape index: {}]
  %s14 = inlined_call_operand.vmem [shape: f32[16,128], index: 14, kind: output, shape index: {}]
  %s15 = sld [smem:[#allocation0]]
  $region102: #{incep_gcn_block_apply.1} parent=0
    _
  %s17 = ssub.s32 1, %s15
  %s18 = scalar_select 0, %s17, %s15
  $region1: #{incep_gcn_block_apply.1} parent=0
    #allocation2 [shape = 'u8[4096]{0}', space=vmem, size = 0x1000, scoped, tag = 'input window, operand 0, single buffered']
    #allocation3 [shape = 's32[1]{0}', space=sflag, size = 0x4, scoped, tag = 'scoped memory for incep_gcn_block_apply.1']
    #allocation4 [shape = 'u8[4096]{0}', space=vmem, size = 0x1000, scoped, tag = 'input window, operand 1, single buffered']
    #allocation5 [shape = 's32[1]{0}', space=sflag, size = 0x4, scoped, tag = 'scoped memory for incep_gcn_block_apply.1']
    #allocation6 [shape = 'u8[98304]{0}', space=vmem, size = 0x18000, scoped, tag = 'input window, operand 2, single buffered']
    #allocation7 [shape = 'u8[32768]{0}', space=vmem, size = 0x8000, scoped, tag = 'input window, operand 4, single buffered']
    #allocation8 [shape = 's32[1]{0}', space=sflag, size = 0x4, scoped, tag = 'scoped memory for incep_gcn_block_apply.1']
    #allocation9 [shape = 'u8[32768]{0}', space=vmem, size = 0x8000, scoped, tag = 'input window, operand 6, single buffered']
    #allocation10 [shape = 'u8[32768]{0}', space=vmem, size = 0x8000, scoped, tag = 'input window, operand 8, single buffered']
    #allocation11 [shape = 's32[1]{0}', space=sflag, size = 0x4, scoped, tag = 'scoped memory for incep_gcn_block_apply.1']
    #allocation12 [shape = 'u8[32768]{0}', space=vmem, size = 0x8000, scoped, tag = 'input window, operand 10, single buffered']
    #allocation13 [shape = 'u8[32768]{0}', space=vmem, size = 0x8000, scoped, tag = 'input window, operand 11, single buffered']
    #allocation14 [shape = 's32[1]{0}', space=sflag, size = 0x4, scoped, tag = 'scoped memory for incep_gcn_block_apply.1']
    #allocation15 [shape = 'u8[32768]{0}', space=vmem, size = 0x8000, scoped, tag = 'input window, operand 12, single buffered']
    %19 = vsyncpa [#allocation3], 0
    %20 = vsyncpa [#allocation5], 0
    %21 = vsyncpa [#allocation8], 0
    %22 = vsyncpa [#allocation11], 0
    %23 = vsyncpa [#allocation14], 0
    // Predicated region
    $region2: #{incep_gcn_block_apply.1} parent=1 // pred_check
      _
    $region3: #{incep_gcn_block_apply.1} parent=1 // pred_check_branch
      %25 = sbr.rel (0) target = $region5
    $region4: #{incep_gcn_block_apply.1} parent=1 // pred_region
      %s27 = ssub.s32 128, 128
      %28 = vsyncadd [#allocation3], %s27
      %s29 = sshll.u32 [#allocation2], 4
      %s30 = int_to_ptr.vmem [resolvable:$true] %s29
      %35 = dma.hbm_to_vmem [thread:$0]  %s0, 128, %s30, [#allocation3], 64, 64, 4
    $region5: #{incep_gcn_block_apply.1} parent=1 // pred_fallthru
      _
    // Predicated region
    $region6: #{incep_gcn_block_apply.1} parent=1 // pred_check
      _
    $region7: #{incep_gcn_block_apply.1} parent=1 // pred_check_branch
      %37 = sbr.rel (0) target = $region9
    $region8: #{incep_gcn_block_apply.1} parent=1 // pred_region
      %s39 = ssub.s32 128, 128
      %40 = vsyncadd [#allocation5], %s39
      %s41 = sshll.u32 [#allocation4], 4
      %s42 = int_to_ptr.vmem [resolvable:$true] %s41
      %47 = dma.hbm_to_vmem [thread:$0]  %s1, 128, %s42, [#allocation5], 64, 64, 4
    $region9: #{incep_gcn_block_apply.1} parent=1 // pred_fallthru
      _
    // Predicated region
    $region10: #{incep_gcn_block_apply.1} parent=1 // pred_check
      _
    $region11: #{incep_gcn_block_apply.1} parent=1 // pred_check_branch
      %49 = sbr.rel (0) target = $region13
    $region12: #{incep_gcn_block_apply.1} parent=1 // pred_region
      %s51 = ssub.s32 3072, 3072
      %52 = vsyncadd [#allocation5], %s51
      %s53 = sshll.u32 [#allocation6], 4
      %s54 = int_to_ptr.vmem [resolvable:$true] %s53
      %59 = dma.hbm_to_vmem [thread:$0]  %s2, 3072, %s54, [#allocation5], 192, 192, 12
    $region13: #{incep_gcn_block_apply.1} parent=1 // pred_fallthru
      _
    // Predicated region
    $region14: #{incep_gcn_block_apply.1} parent=1 // pred_check
      _
    $region15: #{incep_gcn_block_apply.1} parent=1 // pred_check_branch
      %61 = sbr.rel (0) target = $region17
    $region16: #{incep_gcn_block_apply.1} parent=1 // pred_region
      _
    $region17: #{incep_gcn_block_apply.1} parent=1 // pred_fallthru
      _
    // Predicated region
    $region18: #{incep_gcn_block_apply.1} parent=1 // pred_check
      _
    $region19: #{incep_gcn_block_apply.1} parent=1 // pred_check_branch
      %63 = sbr.rel (0) target = $region21
    $region20: #{incep_gcn_block_apply.1} parent=1 // pred_region
      %s65 = ssub.s32 1024, 1024
      %66 = vsyncadd [#allocation8], %s65
      %s67 = sshll.u32 [#allocation7], 4
      %s68 = int_to_ptr.vmem [resolvable:$true] %s67
      %73 = dma.hbm_to_vmem [thread:$0]  %s4, 1024, %s68, [#allocation8], 64, 64, 4
    $region21: #{incep_gcn_block_apply.1} parent=1 // pred_fallthru
      _
    // Predicated region
    $region22: #{incep_gcn_block_apply.1} parent=1 // pred_check
      _
    $region23: #{incep_gcn_block_apply.1} parent=1 // pred_check_branch
      %75 = sbr.rel (0) target = $region25
    $region24: #{incep_gcn_block_apply.1} parent=1 // pred_region
      _
    $region25: #{incep_gcn_block_apply.1} parent=1 // pred_fallthru
      _
    // Predicated region
    $region26: #{incep_gcn_block_apply.1} parent=1 // pred_check
      _
    $region27: #{incep_gcn_block_apply.1} parent=1 // pred_check_branch
      %77 = sbr.rel (0) target = $region29
    $region28: #{incep_gcn_block_apply.1} parent=1 // pred_region
      %s79 = ssub.s32 1024, 1024
      %80 = vsyncadd [#allocation8], %s79
      %s81 = sshll.u32 [#allocation9], 4
      %s82 = int_to_ptr.vmem [resolvable:$true] %s81
      %87 = dma.hbm_to_vmem [thread:$0]  %s6, 1024, %s82, [#allocation8], 64, 64, 4
    $region29: #{incep_gcn_block_apply.1} parent=1 // pred_fallthru
      _
    // Predicated region
    $region30: #{incep_gcn_block_apply.1} parent=1 // pred_check
      _
    $region31: #{incep_gcn_block_apply.1} parent=1 // pred_check_branch
      %89 = sbr.rel (0) target = $region33
    $region32: #{incep_gcn_block_apply.1} parent=1 // pred_region
      _
    $region33: #{incep_gcn_block_apply.1} parent=1 // pred_fallthru
      _
    // Predicated region
    $region34: #{incep_gcn_block_apply.1} parent=1 // pred_check
      _
    $region35: #{incep_gcn_block_apply.1} parent=1 // pred_check_branch
      %91 = sbr.rel (0) target = $region37
    $region36: #{incep_gcn_block_apply.1} parent=1 // pred_region
      %s93 = ssub.s32 1024, 1024
      %94 = vsyncadd [#allocation11], %s93
      %s95 = sshll.u32 [#allocation10], 4
      %s96 = int_to_ptr.vmem [resolvable:$true] %s95
      %101 = dma.hbm_to_vmem [thread:$0]  %s8, 1024, %s96, [#allocation11], 64, 64, 4
    $region37: #{incep_gcn_block_apply.1} parent=1 // pred_fallthru
      _
    // Predicated region
    $region38: #{incep_gcn_block_apply.1} parent=1 // pred_check
      _
    $region39: #{incep_gcn_block_apply.1} parent=1 // pred_check_branch
      %103 = sbr.rel (0) target = $region41
    $region40: #{incep_gcn_block_apply.1} parent=1 // pred_region
      _
    $region41: #{incep_gcn_block_apply.1} parent=1 // pred_fallthru
      _
    // Predicated region
    $region42: #{incep_gcn_block_apply.1} parent=1 // pred_check
      _
    $region43: #{incep_gcn_block_apply.1} parent=1 // pred_check_branch
      %105 = sbr.rel (0) target = $region45
    $region44: #{incep_gcn_block_apply.1} parent=1 // pred_region
      %s107 = ssub.s32 1024, 1024
      %108 = vsyncadd [#allocation11], %s107
      %s109 = sshll.u32 [#allocation12], 4
      %s110 = int_to_ptr.vmem [resolvable:$true] %s109
      %115 = dma.hbm_to_vmem [thread:$0]  %s10, 1024, %s110, [#allocation11], 64, 64, 4
    $region45: #{incep_gcn_block_apply.1} parent=1 // pred_fallthru
      _
    // Predicated region
    $region46: #{incep_gcn_block_apply.1} parent=1 // pred_check
      _
    $region47: #{incep_gcn_block_apply.1} parent=1 // pred_check_branch
      %117 = sbr.rel (0) target = $region49
    $region48: #{incep_gcn_block_apply.1} parent=1 // pred_region
      %s119 = ssub.s32 1024, 1024
      %120 = vsyncadd [#allocation14], %s119
      %s121 = sshll.u32 [#allocation13], 4
      %s122 = int_to_ptr.vmem [resolvable:$true] %s121
      %127 = dma.hbm_to_vmem [thread:$0]  %s11, 1024, %s122, [#allocation14], 64, 64, 4
    $region49: #{incep_gcn_block_apply.1} parent=1 // pred_fallthru
      _
    // Predicated region
    $region50: #{incep_gcn_block_apply.1} parent=1 // pred_check
      _
    $region51: #{incep_gcn_block_apply.1} parent=1 // pred_check_branch
      %129 = sbr.rel (0) target = $region53
    $region52: #{incep_gcn_block_apply.1} parent=1 // pred_region
      %s131 = ssub.s32 1024, 1024
      %132 = vsyncadd [#allocation14], %s131
      %s133 = sshll.u32 [#allocation15], 4
      %s134 = int_to_ptr.vmem [resolvable:$true] %s133
      %139 = dma.hbm_to_vmem [thread:$0]  %s12, 1024, %s134, [#allocation14], 64, 64, 4
    $region53: #{incep_gcn_block_apply.1} parent=1 // pred_fallthru
      _
    // Predicated region
    $region54: #{incep_gcn_block_apply.1} parent=1 // pred_check
      _
    $region55: #{incep_gcn_block_apply.1} parent=1 // pred_check_branch
      %141 = sbr.rel (0) target = $region57
    $region56: #{incep_gcn_block_apply.1} parent=1 // pred_region
      _
    $region57: #{incep_gcn_block_apply.1} parent=1 // pred_fallthru
      _
    // Predicated region
    $region58: #{incep_gcn_block_apply.1} parent=1 // pred_check
      _
    $region59: #{incep_gcn_block_apply.1} parent=1 // pred_check_branch
      %143 = sbr.rel (0) target = $region61
    $region60: #{incep_gcn_block_apply.1} parent=1 // pred_region
      %144 = dma.done [#allocation3], 128
    $region61: #{incep_gcn_block_apply.1} parent=1 // pred_fallthru
      _
    // Predicated region
    $region62: #{incep_gcn_block_apply.1} parent=1 // pred_check
      _
    $region63: #{incep_gcn_block_apply.1} parent=1 // pred_check_branch
      %146 = sbr.rel (0) target = $region65
    $region64: #{incep_gcn_block_apply.1} parent=1 // pred_region
      %147 = dma.done [#allocation5], 128
    $region65: #{incep_gcn_block_apply.1} parent=1 // pred_fallthru
      _
    // Predicated region
    $region66: #{incep_gcn_block_apply.1} parent=1 // pred_check
      _
    $region67: #{incep_gcn_block_apply.1} parent=1 // pred_check_branch
      %149 = sbr.rel (0) target = $region69
    $region68: #{incep_gcn_block_apply.1} parent=1 // pred_region
      %150 = dma.done [#allocation5], 3072
    $region69: #{incep_gcn_block_apply.1} parent=1 // pred_fallthru
      _
    // Predicated region
    $region70: #{incep_gcn_block_apply.1} parent=1 // pred_check
      _
    $region71: #{incep_gcn_block_apply.1} parent=1 // pred_check_branch
      %152 = sbr.rel (0) target = $region73
    $region72: #{incep_gcn_block_apply.1} parent=1 // pred_region
      %153 = dma.done [#allocation8], 1024
    $region73: #{incep_gcn_block_apply.1} parent=1 // pred_fallthru
      _
    // Predicated region
    $region74: #{incep_gcn_block_apply.1} parent=1 // pred_check
      _
    $region75: #{incep_gcn_block_apply.1} parent=1 // pred_check_branch
      %155 = sbr.rel (0) target = $region77
    $region76: #{incep_gcn_block_apply.1} parent=1 // pred_region
      %156 = dma.done [#allocation8], 1024
    $region77: #{incep_gcn_block_apply.1} parent=1 // pred_fallthru
      _
    // Predicated region
    $region78: #{incep_gcn_block_apply.1} parent=1 // pred_check
      _
    $region79: #{incep_gcn_block_apply.1} parent=1 // pred_check_branch
      %158 = sbr.rel (0) target = $region81
    $region80: #{incep_gcn_block_apply.1} parent=1 // pred_region
      %159 = dma.done [#allocation11], 1024
    $region81: #{incep_gcn_block_apply.1} parent=1 // pred_fallthru
      _
    // Predicated region
    $region82: #{incep_gcn_block_apply.1} parent=1 // pred_check
      _
    $region83: #{incep_gcn_block_apply.1} parent=1 // pred_check_branch
      %161 = sbr.rel (0) target = $region85
    $region84: #{incep_gcn_block_apply.1} parent=1 // pred_region
      %162 = dma.done [#allocation11], 1024
    $region85: #{incep_gcn_block_apply.1} parent=1 // pred_fallthru
      _
    // Predicated region
    $region86: #{incep_gcn_block_apply.1} parent=1 // pred_check
      _
    $region87: #{incep_gcn_block_apply.1} parent=1 // pred_check_branch
      %164 = sbr.rel (0) target = $region89
    $region88: #{incep_gcn_block_apply.1} parent=1 // pred_region
      %165 = dma.done [#allocation14], 1024
    $region89: #{incep_gcn_block_apply.1} parent=1 // pred_fallthru
      _
    // Predicated region
    $region90: #{incep_gcn_block_apply.1} parent=1 // pred_check
      _
    $region91: #{incep_gcn_block_apply.1} parent=1 // pred_check_branch
      %167 = sbr.rel (0) target = $region93
    $region92: #{incep_gcn_block_apply.1} parent=1 // pred_region
      %168 = dma.done [#allocation14], 1024
    $region93: #{incep_gcn_block_apply.1} parent=1 // pred_fallthru
      _
    %v170 = vld [vmem:[#allocation2] sm:$0xf]
    %v171 = vld [vmem:[#allocation2 + $0x4] sm:$0xf]
    %v172 = vld [vmem:[#allocation4] sm:$0xf]
    %v173 = vld [vmem:[#allocation4 + $0x4] sm:$0xf]
    %v176 = vunpack.c.l.b16 %v170
    %v177 = vunpack.c.l.b16 %v171
    %v178 = vpack.c.b16 %v177, %v176
    %v181 = vunpack.c.l.b16 %v172
    %v182 = vunpack.c.l.b16 %v173
    %v183 = vpack.c.b16 %v182, %v181
    %vm185 = vcmask 130048
    %v187 = vsel %vm185, %v178, 0
    %189 = vmatprep.subr.bf16.mxu0 0
    %190 = vmatpush1.bf16.msra.mxu0 %v183
    %191 = vmatprep.subr.bf16.mxu0 0
    %192 = vmatpush1.bf16.msra.mxu0 0
    %193 = vmatprep.subr.bf16.mxu0 0
    %194 = vmatpush1.bf16.msra.mxu0 0
    %195 = vmatprep.subr.bf16.mxu0 0
    %196 = vmatpush1.bf16.msra.mxu0 0
    %197 = vmatprep.subr.bf16.mxu0 0
    %198 = vmatpush1.bf16.msra.mxu0 0
    %199 = vmatprep.subr.bf16.mxu0 0
    %200 = vmatpush1.bf16.msra.mxu0 0
    %201 = vmatprep.subr.bf16.mxu0 0
    %202 = vmatpush1.bf16.msra.mxu0 0
    %203 = vmatprep.subr.bf16.mxu0 0
    %204 = vmatpush1.bf16.msra.mxu0 0
    %205 = vmatprep.subr.bf16.mxu0 0
    %206 = vmatpush1.bf16.msra.mxu0 0
    %207 = vmatprep.subr.bf16.mxu0 0
    %208 = vmatpush1.bf16.msra.mxu0 0
    %209 = vmatprep.subr.bf16.mxu0 0
    %210 = vmatpush1.bf16.msra.mxu0 0
    %211 = vmatprep.subr.bf16.mxu0 0
    %212 = vmatpush1.bf16.msra.mxu0 0
    %213 = vmatprep.subr.bf16.mxu0 0
    %214 = vmatpush1.bf16.msra.mxu0 0
    %215 = vmatprep.subr.bf16.mxu0 0
    %216 = vmatpush1.bf16.msra.mxu0 0
    %217 = vmatprep.subr.bf16.mxu0 0
    %218 = vmatpush1.bf16.msra.mxu0 0
    %219 = vmatprep.subr.bf16.mxu0 0
    %220 = vmatpush1.bf16.msra.mxu0 0
    %221 = vmatprep.mubr.bf16.mxu0 0
    %222 = vmatmul.mubr.bf16.gmra.mrb[0].mxu0 %v187
    %v223 = vpop.f32.mrb[0].mxu0
    %v224 = vadd.f32 0.0, %v223
    %v225 = vpop.f32.mrb[0].mxu0
    %v226 = vpop.f32.mrb[0].mxu0
    %v227 = vadd.f32 0.0, %v226
    %v228 = vpop.f32.mrb[0].mxu0
    %229 = vdwg.mxu0
    %v230 = vpack.c.bf16 %v227, %v224
    %v231 = vld [vmem:[#allocation6] sm:$0xff]
    %v232 = vld [vmem:[#allocation6 + $0x8] sm:$0xf]
    %v233 = vld [vmem:[#allocation6 + $0xc] sm:$0xff]
    %v234 = vld [vmem:[#allocation6 + $0x14] sm:$0xf]
    %v235 = vld [vmem:[#allocation6 + $0x18] sm:$0xff]
    %v236 = vld [vmem:[#allocation6 + $0x20] sm:$0xf]
    %v237 = vld [vmem:[#allocation6 + $0x24] sm:$0xff]
    %v238 = vld [vmem:[#allocation6 + $0x2c] sm:$0xf]
    %v239 = vld [vmem:[#allocation6 + $0x30] sm:$0xff]
    %v240 = vld [vmem:[#allocation6 + $0x38] sm:$0xf]
    %v241 = vld [vmem:[#allocation6 + $0x3c] sm:$0xff]
    %v242 = vld [vmem:[#allocation6 + $0x44] sm:$0xf]
    %v243 = vld [vmem:[#allocation6 + $0x48] sm:$0xff]
    %v244 = vld [vmem:[#allocation6 + $0x50] sm:$0xf]
    %v245 = vld [vmem:[#allocation6 + $0x54] sm:$0xff]
    %v246 = vld [vmem:[#allocation6 + $0x5c] sm:$0xf]
    %v247 = vld [vmem:[#allocation6 + $0x60] sm:$0xff]
    %v248 = vld [vmem:[#allocation6 + $0x68] sm:$0xf]
    %v249 = vld [vmem:[#allocation6 + $0x6c] sm:$0xff]
    %v250 = vld [vmem:[#allocation6 + $0x74] sm:$0xf]
    %v251 = vld [vmem:[#allocation6 + $0x78] sm:$0xff]
    %v252 = vld [vmem:[#allocation6 + $0x80] sm:$0xf]
    %v253 = vld [vmem:[#allocation6 + $0x84] sm:$0xff]
    %v254 = vld [vmem:[#allocation6 + $0x8c] sm:$0xf]
    %v255 = vld [vmem:[#allocation6 + $0x90] sm:$0xff]
    %v256 = vld [vmem:[#allocation6 + $0x98] sm:$0xf]
    %v257 = vld [vmem:[#allocation6 + $0x9c] sm:$0xff]
    %v258 = vld [vmem:[#allocation6 + $0xa4] sm:$0xf]
    %v259 = vld [vmem:[#allocation6 + $0xa8] sm:$0xff]
    %v260 = vld [vmem:[#allocation6 + $0xb0] sm:$0xf]
    %v261 = vld [vmem:[#allocation6 + $0xb4] sm:$0xff]
    %v262 = vld [vmem:[#allocation6 + $0xbc] sm:$0xf]
    %v263 = vld [vmem:[%s3] sm:$0x7]
    %v265 = vlaneseq
    %v266 = vshrl.u32 %v265, 7
    %v267 = vsub.s32 0, %v266
    %v268 = vrot.slane %v263, %v267
    %v269 = vlaneseq
    %v270 = vshrl.u32 %v269, 7
    %v271 = vsub.s32 1, %v270
    %v272 = vrot.slane %v263, %v271
    %v273 = vlaneseq
    %v274 = vshrl.u32 %v273, 7
    %v275 = vsub.s32 2, %v274
    %v276 = vrot.slane %v263, %v275
    %v312 = vunpack.c.l.b16 %v231
    %v313 = vunpack.c.h.b16 %v231
    %v314 = vunpack.c.l.b16 %v232
    %v315 = vunpack.c.l.b16 %v233
    %v316 = vunpack.c.h.b16 %v233
    %v317 = vunpack.c.l.b16 %v234
    %v318 = vunpack.c.l.b16 %v235
    %v319 = vunpack.c.h.b16 %v235
    %v320 = vunpack.c.l.b16 %v236
    %v321 = vunpack.c.l.b16 %v237
    %v322 = vunpack.c.h.b16 %v237
    %v323 = vunpack.c.l.b16 %v238
    %v324 = vunpack.c.l.b16 %v239
    %v325 = vunpack.c.h.b16 %v239
    %v326 = vunpack.c.l.b16 %v240
    %v327 = vunpack.c.l.b16 %v241
    %v328 = vunpack.c.h.b16 %v241
    %v329 = vunpack.c.l.b16 %v242
    %v330 = vunpack.c.l.b16 %v243
    %v331 = vunpack.c.h.b16 %v243
    %v332 = vunpack.c.l.b16 %v244
    %v333 = vunpack.c.l.b16 %v245
    %v334 = vunpack.c.h.b16 %v245
    %v335 = vunpack.c.l.b16 %v246
    %v336 = vunpack.c.l.b16 %v247
    %v337 = vunpack.c.h.b16 %v247
    %v338 = vunpack.c.l.b16 %v248
    %v339 = vunpack.c.l.b16 %v249
    %v340 = vunpack.c.h.b16 %v249
    %v341 = vunpack.c.l.b16 %v250
    %v342 = vunpack.c.l.b16 %v251
    %v343 = vunpack.c.h.b16 %v251
    %v344 = vunpack.c.l.b16 %v252
    %v345 = vunpack.c.l.b16 %v253
    %v346 = vunpack.c.h.b16 %v253
    %v347 = vunpack.c.l.b16 %v254
    %v348 = vunpack.c.l.b16 %v255
    %v349 = vunpack.c.h.b16 %v255
    %v350 = vunpack.c.l.b16 %v256
    %v351 = vunpack.c.l.b16 %v257
    %v352 = vunpack.c.h.b16 %v257
    %v353 = vunpack.c.l.b16 %v258
    %v354 = vunpack.c.l.b16 %v259
    %v355 = vunpack.c.h.b16 %v259
    %v356 = vunpack.c.l.b16 %v260
    %v357 = vunpack.c.l.b16 %v261
    %v358 = vunpack.c.h.b16 %v261
    %v359 = vunpack.c.l.b16 %v262
    %v360 = vpack.c.b16 %v315, %v312
    %v361 = vpack.c.b16 %v316, %v313
    %v362 = vpack.c.b16 %v317, %v314
    %v363 = vpack.c.b16 %v321, %v318
    %v364 = vpack.c.b16 %v322, %v319
    %v365 = vpack.c.b16 %v323, %v320
    %v366 = vpack.c.b16 %v327, %v324
    %v367 = vpack.c.b16 %v328, %v325
    %v368 = vpack.c.b16 %v329, %v326
    %v369 = vpack.c.b16 %v333, %v330
    %v370 = vpack.c.b16 %v334, %v331
    %v371 = vpack.c.b16 %v335, %v332
    %v372 = vpack.c.b16 %v339, %v336
    %v373 = vpack.c.b16 %v340, %v337
    %v374 = vpack.c.b16 %v341, %v338
    %v375 = vpack.c.b16 %v345, %v342
    %v376 = vpack.c.b16 %v346, %v343
    %v377 = vpack.c.b16 %v347, %v344
    %v378 = vpack.c.b16 %v351, %v348
    %v379 = vpack.c.b16 %v352, %v349
    %v380 = vpack.c.b16 %v353, %v350
    %v381 = vpack.c.b16 %v357, %v354
    %v382 = vpack.c.b16 %v358, %v355
    %v383 = vpack.c.b16 %v359, %v356
    %408 = vmatprep.subr.bf16.mxu0 %v361
    %409 = vmatpush1.bf16.msra.mxu0 %v360
    %410 = vmatprep.subr.bf16.mxu0 %v364
    %411 = vmatpush1.bf16.msra.mxu0 %v363
    %412 = vmatprep.subr.bf16.mxu0 %v367
    %413 = vmatpush1.bf16.msra.mxu0 %v366
    %414 = vmatprep.subr.bf16.mxu0 %v370
    %415 = vmatpush1.bf16.msra.mxu0 %v369
    %416 = vmatprep.subr.bf16.mxu0 %v373
    %417 = vmatpush1.bf16.msra.mxu0 %v372
    %418 = vmatprep.subr.bf16.mxu0 %v376
    %419 = vmatpush1.bf16.msra.mxu0 %v375
    %420 = vmatprep.subr.bf16.mxu0 %v379
    %421 = vmatpush1.bf16.msra.mxu0 %v378
    %422 = vmatprep.subr.bf16.mxu0 %v382
    %423 = vmatpush1.bf16.msra.mxu0 %v381
    %424 = vmatprep.subr.bf16.mxu0 0
    %425 = vmatpush1.bf16.msra.mxu0 0
    %426 = vmatprep.subr.bf16.mxu0 0
    %427 = vmatpush1.bf16.msra.mxu0 0
    %428 = vmatprep.subr.bf16.mxu0 0
    %429 = vmatpush1.bf16.msra.mxu0 0
    %430 = vmatprep.subr.bf16.mxu0 0
    %431 = vmatpush1.bf16.msra.mxu0 0
    %432 = vmatprep.subr.bf16.mxu0 0
    %433 = vmatpush1.bf16.msra.mxu0 0
    %434 = vmatprep.subr.bf16.mxu0 0
    %435 = vmatpush1.bf16.msra.mxu0 0
    %436 = vmatprep.subr.bf16.mxu0 0
    %437 = vmatpush1.bf16.msra.mxu0 0
    %438 = vmatprep.subr.bf16.mxu0 0
    %439 = vmatpush1.bf16.msra.mxu0 0
    %440 = vmatprep.mubr.bf16.mxu0 0
    %441 = vmatmul.mubr.bf16.gmra.mrb[0].mxu0 %v230
    %v442 = vpop.f32.mrb[0].mxu0
    %v443 = vadd.f32 %v268, %v442
    %v444 = vpop.f32.mrb[0].mxu0
    %v445 = vadd.f32 %v272, %v444
    %v446 = vpop.f32.mrb[0].mxu0
    %v447 = vadd.f32 %v268, %v446
    %v448 = vpop.f32.mrb[0].mxu0
    %v449 = vadd.f32 %v272, %v448
    %450 = vdwg.mxu0
    %451 = vmatprep.subr.bf16.mxu0 0
    %452 = vmatpush1.bf16.msra.mxu0 %v362
    %453 = vmatprep.subr.bf16.mxu0 0
    %454 = vmatpush1.bf16.msra.mxu0 %v365
    %455 = vmatprep.subr.bf16.mxu0 0
    %456 = vmatpush1.bf16.msra.mxu0 %v368
    %457 = vmatprep.subr.bf16.mxu0 0
    %458 = vmatpush1.bf16.msra.mxu0 %v371
    %459 = vmatprep.subr.bf16.mxu0 0
    %460 = vmatpush1.bf16.msra.mxu0 %v374
    %461 = vmatprep.subr.bf16.mxu0 0
    %462 = vmatpush1.bf16.msra.mxu0 %v377
    %463 = vmatprep.subr.bf16.mxu0 0
    %464 = vmatpush1.bf16.msra.mxu0 %v380
    %465 = vmatprep.subr.bf16.mxu0 0
    %466 = vmatpush1.bf16.msra.mxu0 %v383
    %467 = vmatprep.subr.bf16.mxu0 0
    %468 = vmatpush1.bf16.msra.mxu0 0
    %469 = vmatprep.subr.bf16.mxu0 0
    %470 = vmatpush1.bf16.msra.mxu0 0
    %471 = vmatprep.subr.bf16.mxu0 0
    %472 = vmatpush1.bf16.msra.mxu0 0
    %473 = vmatprep.subr.bf16.mxu0 0
    %474 = vmatpush1.bf16.msra.mxu0 0
    %475 = vmatprep.subr.bf16.mxu0 0
    %476 = vmatpush1.bf16.msra.mxu0 0
    %477 = vmatprep.subr.bf16.mxu0 0
    %478 = vmatpush1.bf16.msra.mxu0 0
    %479 = vmatprep.subr.bf16.mxu0 0
    %480 = vmatpush1.bf16.msra.mxu0 0
    %481 = vmatprep.subr.bf16.mxu0 0
    %482 = vmatpush1.bf16.msra.mxu0 0
    %483 = vmatprep.mubr.bf16.mxu0 0
    %484 = vmatmul.mubr.bf16.gmra.mrb[0].mxu0 %v230
    %v485 = vpop.f32.mrb[0].mxu0
    %v486 = vadd.f32 %v276, %v485
    %v487 = vpop.f32.mrb[0].mxu0
    %v488 = vpop.f32.mrb[0].mxu0
    %v489 = vadd.f32 %v276, %v488
    %v490 = vpop.f32.mrb[0].mxu0
    %491 = vdwg.mxu0
    %v492 = vmax.f32 %v443, 0.0
    %v493 = vmax.f32 %v445, 0.0
    %v494 = vmax.f32 %v486, 0.0
    %v495 = vmax.f32 %v447, 0.0
    %v496 = vmax.f32 %v449, 0.0
    %v497 = vmax.f32 %v489, 0.0
    %v498 = vpack.c.bf16 %v495, %v492
    %v499 = vpack.c.bf16 %v496, %v493
    %v500 = vpack.c.bf16 %v497, %v494
    %v501 = vld [vmem:[#allocation7] sm:$0xf]
    %v502 = vld [vmem:[#allocation7 + $0x4] sm:$0xf]
    %v503 = vld [vmem:[#allocation7 + $0x8] sm:$0xf]
    %v504 = vld [vmem:[#allocation7 + $0xc] sm:$0xf]
    %v505 = vld [vmem:[#allocation7 + $0x10] sm:$0xf]
    %v506 = vld [vmem:[#allocation7 + $0x14] sm:$0xf]
    %v507 = vld [vmem:[#allocation7 + $0x18] sm:$0xf]
    %v508 = vld [vmem:[#allocation7 + $0x1c] sm:$0xf]
    %v509 = vld [vmem:[#allocation7 + $0x20] sm:$0xf]
    %v510 = vld [vmem:[#allocation7 + $0x24] sm:$0xf]
    %v511 = vld [vmem:[#allocation7 + $0x28] sm:$0xf]
    %v512 = vld [vmem:[#allocation7 + $0x2c] sm:$0xf]
    %v513 = vld [vmem:[#allocation7 + $0x30] sm:$0xf]
    %v514 = vld [vmem:[#allocation7 + $0x34] sm:$0xf]
    %v515 = vld [vmem:[#allocation7 + $0x38] sm:$0xf]
    %v516 = vld [vmem:[#allocation7 + $0x3c] sm:$0xf]
    %v533 = vunpack.c.l.b16 %v501
    %v534 = vunpack.c.l.b16 %v502
    %v535 = vunpack.c.l.b16 %v503
    %v536 = vunpack.c.l.b16 %v504
    %v537 = vunpack.c.l.b16 %v505
    %v538 = vunpack.c.l.b16 %v506
    %v539 = vunpack.c.l.b16 %v507
    %v540 = vunpack.c.l.b16 %v508
    %v541 = vunpack.c.l.b16 %v509
    %v542 = vunpack.c.l.b16 %v510
    %v543 = vunpack.c.l.b16 %v511
    %v544 = vunpack.c.l.b16 %v512
    %v545 = vunpack.c.l.b16 %v513
    %v546 = vunpack.c.l.b16 %v514
    %v547 = vunpack.c.l.b16 %v515
    %v548 = vunpack.c.l.b16 %v516
    %v549 = vpack.c.b16 %v534, %v533
    %v550 = vpack.c.b16 %v536, %v535
    %v551 = vpack.c.b16 %v538, %v537
    %v552 = vpack.c.b16 %v540, %v539
    %v553 = vpack.c.b16 %v542, %v541
    %v554 = vpack.c.b16 %v544, %v543
    %v555 = vpack.c.b16 %v546, %v545
    %v556 = vpack.c.b16 %v548, %v547
    %565 = vmatprep.subr.bf16.mxu0 0
    %566 = vmatpush1.bf16.msra.mxu0 %v549
    %567 = vmatprep.subr.bf16.mxu0 0
    %568 = vmatpush1.bf16.msra.mxu0 %v550
    %569 = vmatprep.subr.bf16.mxu0 0
    %570 = vmatpush1.bf16.msra.mxu0 %v551
    %571 = vmatprep.subr.bf16.mxu0 0
    %572 = vmatpush1.bf16.msra.mxu0 %v552
    %573 = vmatprep.subr.bf16.mxu0 0
    %574 = vmatpush1.bf16.msra.mxu0 %v553
    %575 = vmatprep.subr.bf16.mxu0 0
    %576 = vmatpush1.bf16.msra.mxu0 %v554
    %577 = vmatprep.subr.bf16.mxu0 0
    %578 = vmatpush1.bf16.msra.mxu0 %v555
    %579 = vmatprep.subr.bf16.mxu0 0
    %580 = vmatpush1.bf16.msra.mxu0 %v556
    %581 = vmatprep.subr.bf16.mxu0 0
    %582 = vmatpush1.bf16.msra.mxu0 0
    %583 = vmatprep.subr.bf16.mxu0 0
    %584 = vmatpush1.bf16.msra.mxu0 0
    %585 = vmatprep.subr.bf16.mxu0 0
    %586 = vmatpush1.bf16.msra.mxu0 0
    %587 = vmatprep.subr.bf16.mxu0 0
    %588 = vmatpush1.bf16.msra.mxu0 0
    %589 = vmatprep.subr.bf16.mxu0 0
    %590 = vmatpush1.bf16.msra.mxu0 0
    %591 = vmatprep.subr.bf16.mxu0 0
    %592 = vmatpush1.bf16.msra.mxu0 0
    %593 = vmatprep.subr.bf16.mxu0 0
    %594 = vmatpush1.bf16.msra.mxu0 0
    %595 = vmatprep.subr.bf16.mxu0 0
    %596 = vmatpush1.bf16.msra.mxu0 0
    %597 = vmatprep.mubr.bf16.mxu0 0
    %598 = vmatmul.mubr.bf16.gmra.mrb[0].mxu0 %v499
    %v599 = vpop.f32.mrb[0].mxu0
    %v600 = vadd.f32 0.0, %v599
    %v601 = vpop.f32.mrb[0].mxu0
    %v602 = vpop.f32.mrb[0].mxu0
    %v603 = vadd.f32 0.0, %v602
    %v604 = vpop.f32.mrb[0].mxu0
    %605 = vdwg.mxu0
    %v606 = vpack.c.bf16 %v603, %v600
    %v607 = vld [vmem:[#allocation9] sm:$0xf]
    %v608 = vld [vmem:[#allocation9 + $0x4] sm:$0xf]
    %v609 = vld [vmem:[#allocation9 + $0x8] sm:$0xf]
    %v610 = vld [vmem:[#allocation9 + $0xc] sm:$0xf]
    %v611 = vld [vmem:[#allocation9 + $0x10] sm:$0xf]
    %v612 = vld [vmem:[#allocation9 + $0x14] sm:$0xf]
    %v613 = vld [vmem:[#allocation9 + $0x18] sm:$0xf]
    %v614 = vld [vmem:[#allocation9 + $0x1c] sm:$0xf]
    %v615 = vld [vmem:[#allocation9 + $0x20] sm:$0xf]
    %v616 = vld [vmem:[#allocation9 + $0x24] sm:$0xf]
    %v617 = vld [vmem:[#allocation9 + $0x28] sm:$0xf]
    %v618 = vld [vmem:[#allocation9 + $0x2c] sm:$0xf]
    %v619 = vld [vmem:[#allocation9 + $0x30] sm:$0xf]
    %v620 = vld [vmem:[#allocation9 + $0x34] sm:$0xf]
    %v621 = vld [vmem:[#allocation9 + $0x38] sm:$0xf]
    %v622 = vld [vmem:[#allocation9 + $0x3c] sm:$0xf]
    %v639 = vunpack.c.l.b16 %v607
    %v640 = vunpack.c.l.b16 %v608
    %v641 = vunpack.c.l.b16 %v609
    %v642 = vunpack.c.l.b16 %v610
    %v643 = vunpack.c.l.b16 %v611
    %v644 = vunpack.c.l.b16 %v612
    %v645 = vunpack.c.l.b16 %v613
    %v646 = vunpack.c.l.b16 %v614
    %v647 = vunpack.c.l.b16 %v615
    %v648 = vunpack.c.l.b16 %v616
    %v649 = vunpack.c.l.b16 %v617
    %v650 = vunpack.c.l.b16 %v618
    %v651 = vunpack.c.l.b16 %v619
    %v652 = vunpack.c.l.b16 %v620
    %v653 = vunpack.c.l.b16 %v621
    %v654 = vunpack.c.l.b16 %v622
    %v655 = vpack.c.b16 %v640, %v639
    %v656 = vpack.c.b16 %v642, %v641
    %v657 = vpack.c.b16 %v644, %v643
    %v658 = vpack.c.b16 %v646, %v645
    %v659 = vpack.c.b16 %v648, %v647
    %v660 = vpack.c.b16 %v650, %v649
    %v661 = vpack.c.b16 %v652, %v651
    %v662 = vpack.c.b16 %v654, %v653
    %671 = vmatprep.subr.bf16.mxu0 0
    %672 = vmatpush1.bf16.msra.mxu0 %v655
    %673 = vmatprep.subr.bf16.mxu0 0
    %674 = vmatpush1.bf16.msra.mxu0 %v656
    %675 = vmatprep.subr.bf16.mxu0 0
    %676 = vmatpush1.bf16.msra.mxu0 %v657
    %677 = vmatprep.subr.bf16.mxu0 0
    %678 = vmatpush1.bf16.msra.mxu0 %v658
    %679 = vmatprep.subr.bf16.mxu0 0
    %680 = vmatpush1.bf16.msra.mxu0 %v659
    %681 = vmatprep.subr.bf16.mxu0 0
    %682 = vmatpush1.bf16.msra.mxu0 %v660
    %683 = vmatprep.subr.bf16.mxu0 0
    %684 = vmatpush1.bf16.msra.mxu0 %v661
    %685 = vmatprep.subr.bf16.mxu0 0
    %686 = vmatpush1.bf16.msra.mxu0 %v662
    %687 = vmatprep.subr.bf16.mxu0 0
    %688 = vmatpush1.bf16.msra.mxu0 0
    %689 = vmatprep.subr.bf16.mxu0 0
    %690 = vmatpush1.bf16.msra.mxu0 0
    %691 = vmatprep.subr.bf16.mxu0 0
    %692 = vmatpush1.bf16.msra.mxu0 0
    %693 = vmatprep.subr.bf16.mxu0 0
    %694 = vmatpush1.bf16.msra.mxu0 0
    %695 = vmatprep.subr.bf16.mxu0 0
    %696 = vmatpush1.bf16.msra.mxu0 0
    %697 = vmatprep.subr.bf16.mxu0 0
    %698 = vmatpush1.bf16.msra.mxu0 0
    %699 = vmatprep.subr.bf16.mxu0 0
    %700 = vmatpush1.bf16.msra.mxu0 0
    %701 = vmatprep.subr.bf16.mxu0 0
    %702 = vmatpush1.bf16.msra.mxu0 0
    %703 = vmatprep.mubr.bf16.mxu0 0
    %704 = vmatmul.mubr.bf16.gmra.mrb[0].mxu0 %v500
    %v705 = vpop.f32.mrb[0].mxu0
    %v706 = vadd.f32 0.0, %v705
    %v707 = vpop.f32.mrb[0].mxu0
    %v708 = vpop.f32.mrb[0].mxu0
    %v709 = vadd.f32 0.0, %v708
    %v710 = vpop.f32.mrb[0].mxu0
    %711 = vdwg.mxu0
    %v712 = vpack.c.bf16 %v709, %v706
    %713 = vmatprep.subr.bf16.mxu0 %v712
    %714 = vmatpush1.bf16.msra.mxu0 %v606
    %715 = vmatprep.subr.bf16.mxu0 0
    %716 = vmatpush1.bf16.msra.mxu0 0
    %717 = vmatprep.subr.bf16.mxu0 0
    %718 = vmatpush1.bf16.msra.mxu0 0
    %719 = vmatprep.subr.bf16.mxu0 0
    %720 = vmatpush1.bf16.msra.mxu0 0
    %721 = vmatprep.subr.bf16.mxu0 0
    %722 = vmatpush1.bf16.msra.mxu0 0
    %723 = vmatprep.subr.bf16.mxu0 0
    %724 = vmatpush1.bf16.msra.mxu0 0
    %725 = vmatprep.subr.bf16.mxu0 0
    %726 = vmatpush1.bf16.msra.mxu0 0
    %727 = vmatprep.subr.bf16.mxu0 0
    %728 = vmatpush1.bf16.msra.mxu0 0
    %729 = vmatprep.subr.bf16.mxu0 0
    %730 = vmatpush1.bf16.msra.mxu0 0
    %731 = vmatprep.subr.bf16.mxu0 0
    %732 = vmatpush1.bf16.msra.mxu0 0
    %733 = vmatprep.subr.bf16.mxu0 0
    %734 = vmatpush1.bf16.msra.mxu0 0
    %735 = vmatprep.subr.bf16.mxu0 0
    %736 = vmatpush1.bf16.msra.mxu0 0
    %737 = vmatprep.subr.bf16.mxu0 0
    %738 = vmatpush1.bf16.msra.mxu0 0
    %739 = vmatprep.subr.bf16.mxu0 0
    %740 = vmatpush1.bf16.msra.mxu0 0
    %741 = vmatprep.subr.bf16.mxu0 0
    %742 = vmatpush1.bf16.msra.mxu0 0
    %743 = vmatprep.subr.bf16.mxu0 0
    %744 = vmatpush1.bf16.msra.mxu0 0
    %745 = vmatprep.mubr.bf16.mxu0 0
    %746 = vmatmul.mubr.bf16.gmra.mrb[0].mxu0 %v187
    %v747 = vpop.f32.mrb[0].mxu0
    %v748 = vadd.f32 0.0, %v747
    %v749 = vpop.f32.mrb[0].mxu0
    %v750 = vadd.f32 0.0, %v749
    %v751 = vpop.f32.mrb[0].mxu0
    %v752 = vadd.f32 0.0, %v751
    %v753 = vpop.f32.mrb[0].mxu0
    %v754 = vadd.f32 0.0, %v753
    %755 = vdwg.mxu0
    %v756 = vld [vmem:[%s5] sm:$0x1]
    %v758 = vlaneseq
    %v759 = vshrl.u32 %v758, 7
    %v760 = vsub.s32 0, %v759
    %v761 = vrot.slane %v756, %v760
    %v763 = vadd.f32 %v748, %v761
    %v764 = vadd.f32 %v752, %v761
    %v765 = vmax.f32 %v763, 0.0
    %v766 = vmax.f32 %v764, 0.0
    %v767 = vpack.c.bf16 %v766, %v765
    %v768 = vld [vmem:[%s7] sm:$0x1]
    %v770 = vlaneseq
    %v771 = vshrl.u32 %v770, 7
    %v772 = vsub.s32 0, %v771
    %v773 = vrot.slane %v768, %v772
    %v775 = vadd.f32 %v750, %v773
    %v776 = vadd.f32 %v754, %v773
    %v777 = vmax.f32 %v775, 0.0
    %v778 = vmax.f32 %v776, 0.0
    %v779 = vpack.c.bf16 %v778, %v777
    %v780 = vld [vmem:[#allocation10] sm:$0xf]
    %v781 = vld [vmem:[#allocation10 + $0x4] sm:$0xf]
    %v782 = vld [vmem:[#allocation10 + $0x8] sm:$0xf]
    %v783 = vld [vmem:[#allocation10 + $0xc] sm:$0xf]
    %v784 = vld [vmem:[#allocation10 + $0x10] sm:$0xf]
    %v785 = vld [vmem:[#allocation10 + $0x14] sm:$0xf]
    %v786 = vld [vmem:[#allocation10 + $0x18] sm:$0xf]
    %v787 = vld [vmem:[#allocation10 + $0x1c] sm:$0xf]
    %v788 = vld [vmem:[#allocation10 + $0x20] sm:$0xf]
    %v789 = vld [vmem:[#allocation10 + $0x24] sm:$0xf]
    %v790 = vld [vmem:[#allocation10 + $0x28] sm:$0xf]
    %v791 = vld [vmem:[#allocation10 + $0x2c] sm:$0xf]
    %v792 = vld [vmem:[#allocation10 + $0x30] sm:$0xf]
    %v793 = vld [vmem:[#allocation10 + $0x34] sm:$0xf]
    %v794 = vld [vmem:[#allocation10 + $0x38] sm:$0xf]
    %v795 = vld [vmem:[#allocation10 + $0x3c] sm:$0xf]
    %v812 = vunpack.c.l.b16 %v780
    %v813 = vunpack.c.l.b16 %v781
    %v814 = vunpack.c.l.b16 %v782
    %v815 = vunpack.c.l.b16 %v783
    %v816 = vunpack.c.l.b16 %v784
    %v817 = vunpack.c.l.b16 %v785
    %v818 = vunpack.c.l.b16 %v786
    %v819 = vunpack.c.l.b16 %v787
    %v820 = vunpack.c.l.b16 %v788
    %v821 = vunpack.c.l.b16 %v789
    %v822 = vunpack.c.l.b16 %v790
    %v823 = vunpack.c.l.b16 %v791
    %v824 = vunpack.c.l.b16 %v792
    %v825 = vunpack.c.l.b16 %v793
    %v826 = vunpack.c.l.b16 %v794
    %v827 = vunpack.c.l.b16 %v795
    %v828 = vpack.c.b16 %v813, %v812
    %v829 = vpack.c.b16 %v815, %v814
    %v830 = vpack.c.b16 %v817, %v816
    %v831 = vpack.c.b16 %v819, %v818
    %v832 = vpack.c.b16 %v821, %v820
    %v833 = vpack.c.b16 %v823, %v822
    %v834 = vpack.c.b16 %v825, %v824
    %v835 = vpack.c.b16 %v827, %v826
    %844 = vmatprep.subr.bf16.mxu0 0
    %845 = vmatpush1.bf16.msra.mxu0 %v828
    %846 = vmatprep.subr.bf16.mxu0 0
    %847 = vmatpush1.bf16.msra.mxu0 %v829
    %848 = vmatprep.subr.bf16.mxu0 0
    %849 = vmatpush1.bf16.msra.mxu0 %v830
    %850 = vmatprep.subr.bf16.mxu0 0
    %851 = vmatpush1.bf16.msra.mxu0 %v831
    %852 = vmatprep.subr.bf16.mxu0 0
    %853 = vmatpush1.bf16.msra.mxu0 %v832
    %854 = vmatprep.subr.bf16.mxu0 0
    %855 = vmatpush1.bf16.msra.mxu0 %v833
    %856 = vmatprep.subr.bf16.mxu0 0
    %857 = vmatpush1.bf16.msra.mxu0 %v834
    %858 = vmatprep.subr.bf16.mxu0 0
    %859 = vmatpush1.bf16.msra.mxu0 %v835
    %860 = vmatprep.subr.bf16.mxu0 0
    %861 = vmatpush1.bf16.msra.mxu0 0
    %862 = vmatprep.subr.bf16.mxu0 0
    %863 = vmatpush1.bf16.msra.mxu0 0
    %864 = vmatprep.subr.bf16.mxu0 0
    %865 = vmatpush1.bf16.msra.mxu0 0
    %866 = vmatprep.subr.bf16.mxu0 0
    %867 = vmatpush1.bf16.msra.mxu0 0
    %868 = vmatprep.subr.bf16.mxu0 0
    %869 = vmatpush1.bf16.msra.mxu0 0
    %870 = vmatprep.subr.bf16.mxu0 0
    %871 = vmatpush1.bf16.msra.mxu0 0
    %872 = vmatprep.subr.bf16.mxu0 0
    %873 = vmatpush1.bf16.msra.mxu0 0
    %874 = vmatprep.subr.bf16.mxu0 0
    %875 = vmatpush1.bf16.msra.mxu0 0
    %876 = vmatprep.mubr.bf16.mxu0 0
    %877 = vmatmul.mubr.bf16.gmra.mrb[0].mxu0 %v779
    %v878 = vpop.f32.mrb[0].mxu0
    %v879 = vadd.f32 0.0, %v878
    %v880 = vpop.f32.mrb[0].mxu0
    %v881 = vpop.f32.mrb[0].mxu0
    %v882 = vadd.f32 0.0, %v881
    %v883 = vpop.f32.mrb[0].mxu0
    %884 = vdwg.mxu0
    %v885 = vpack.c.bf16 %v882, %v879
    %v886 = vld [vmem:[%s9] sm:$0x1]
    %v888 = vlaneseq
    %v889 = vshrl.u32 %v888, 7
    %v890 = vsub.s32 0, %v889
    %v891 = vrot.slane %v886, %v890
    %893 = vmatprep.subr.bf16.mxu0 0
    %894 = vmatpush1.bf16.msra.mxu0 %v885
    %895 = vmatprep.subr.bf16.mxu0 0
    %896 = vmatpush1.bf16.msra.mxu0 0
    %897 = vmatprep.subr.bf16.mxu0 0
    %898 = vmatpush1.bf16.msra.mxu0 0
    %899 = vmatprep.subr.bf16.mxu0 0
    %900 = vmatpush1.bf16.msra.mxu0 0
    %901 = vmatprep.subr.bf16.mxu0 0
    %902 = vmatpush1.bf16.msra.mxu0 0
    %903 = vmatprep.subr.bf16.mxu0 0
    %904 = vmatpush1.bf16.msra.mxu0 0
    %905 = vmatprep.subr.bf16.mxu0 0
    %906 = vmatpush1.bf16.msra.mxu0 0
    %907 = vmatprep.subr.bf16.mxu0 0
    %908 = vmatpush1.bf16.msra.mxu0 0
    %909 = vmatprep.subr.bf16.mxu0 0
    %910 = vmatpush1.bf16.msra.mxu0 0
    %911 = vmatprep.subr.bf16.mxu0 0
    %912 = vmatpush1.bf16.msra.mxu0 0
    %913 = vmatprep.subr.bf16.mxu0 0
    %914 = vmatpush1.bf16.msra.mxu0 0
    %915 = vmatprep.subr.bf16.mxu0 0
    %916 = vmatpush1.bf16.msra.mxu0 0
    %917 = vmatprep.subr.bf16.mxu0 0
    %918 = vmatpush1.bf16.msra.mxu0 0
    %919 = vmatprep.subr.bf16.mxu0 0
    %920 = vmatpush1.bf16.msra.mxu0 0
    %921 = vmatprep.subr.bf16.mxu0 0
    %922 = vmatpush1.bf16.msra.mxu0 0
    %923 = vmatprep.subr.bf16.mxu0 0
    %924 = vmatpush1.bf16.msra.mxu0 0
    %925 = vmatprep.mubr.bf16.mxu0 0
    %926 = vmatmul.mubr.bf16.gmra.mrb[0].mxu0 %v187
    %v927 = vpop.f32.mrb[0].mxu0
    %v928 = vadd.f32 %v891, %v927
    %v929 = vpop.f32.mrb[0].mxu0
    %v930 = vpop.f32.mrb[0].mxu0
    %v931 = vadd.f32 %v891, %v930
    %v932 = vpop.f32.mrb[0].mxu0
    %933 = vdwg.mxu0
    %v934 = vmax.f32 %v928, 0.0
    %v935 = vmax.f32 %v931, 0.0
    %v936 = vpack.c.bf16 %v935, %v934
    %v937 = vld [vmem:[#allocation12] sm:$0xf]
    %v938 = vld [vmem:[#allocation12 + $0x4] sm:$0xf]
    %v939 = vld [vmem:[#allocation12 + $0x8] sm:$0xf]
    %v940 = vld [vmem:[#allocation12 + $0xc] sm:$0xf]
    %v941 = vld [vmem:[#allocation12 + $0x10] sm:$0xf]
    %v942 = vld [vmem:[#allocation12 + $0x14] sm:$0xf]
    %v943 = vld [vmem:[#allocation12 + $0x18] sm:$0xf]
    %v944 = vld [vmem:[#allocation12 + $0x1c] sm:$0xf]
    %v945 = vld [vmem:[#allocation12 + $0x20] sm:$0xf]
    %v946 = vld [vmem:[#allocation12 + $0x24] sm:$0xf]
    %v947 = vld [vmem:[#allocation12 + $0x28] sm:$0xf]
    %v948 = vld [vmem:[#allocation12 + $0x2c] sm:$0xf]
    %v949 = vld [vmem:[#allocation12 + $0x30] sm:$0xf]
    %v950 = vld [vmem:[#allocation12 + $0x34] sm:$0xf]
    %v951 = vld [vmem:[#allocation12 + $0x38] sm:$0xf]
    %v952 = vld [vmem:[#allocation12 + $0x3c] sm:$0xf]
    %v953 = vld [vmem:[#allocation13] sm:$0xf]
    %v954 = vld [vmem:[#allocation13 + $0x4] sm:$0xf]
    %v955 = vld [vmem:[#allocation13 + $0x8] sm:$0xf]
    %v956 = vld [vmem:[#allocation13 + $0xc] sm:$0xf]
    %v957 = vld [vmem:[#allocation13 + $0x10] sm:$0xf]
    %v958 = vld [vmem:[#allocation13 + $0x14] sm:$0xf]
    %v959 = vld [vmem:[#allocation13 + $0x18] sm:$0xf]
    %v960 = vld [vmem:[#allocation13 + $0x1c] sm:$0xf]
    %v961 = vld [vmem:[#allocation13 + $0x20] sm:$0xf]
    %v962 = vld [vmem:[#allocation13 + $0x24] sm:$0xf]
    %v963 = vld [vmem:[#allocation13 + $0x28] sm:$0xf]
    %v964 = vld [vmem:[#allocation13 + $0x2c] sm:$0xf]
    %v965 = vld [vmem:[#allocation13 + $0x30] sm:$0xf]
    %v966 = vld [vmem:[#allocation13 + $0x34] sm:$0xf]
    %v967 = vld [vmem:[#allocation13 + $0x38] sm:$0xf]
    %v968 = vld [vmem:[#allocation13 + $0x3c] sm:$0xf]
    %v985 = vunpack.c.l.b16 %v953
    %v986 = vunpack.c.l.b16 %v954
    %v987 = vunpack.c.l.b16 %v955
    %v988 = vunpack.c.l.b16 %v956
    %v989 = vunpack.c.l.b16 %v957
    %v990 = vunpack.c.l.b16 %v958
    %v991 = vunpack.c.l.b16 %v959
    %v992 = vunpack.c.l.b16 %v960
    %v993 = vunpack.c.l.b16 %v961
    %v994 = vunpack.c.l.b16 %v962
    %v995 = vunpack.c.l.b16 %v963
    %v996 = vunpack.c.l.b16 %v964
    %v997 = vunpack.c.l.b16 %v965
    %v998 = vunpack.c.l.b16 %v966
    %v999 = vunpack.c.l.b16 %v967
    %v1000 = vunpack.c.l.b16 %v968
    %v1001 = vpack.c.b16 %v986, %v985
    %v1002 = vpack.c.b16 %v988, %v987
    %v1003 = vpack.c.b16 %v990, %v989
    %v1004 = vpack.c.b16 %v992, %v991
    %v1005 = vpack.c.b16 %v994, %v993
    %v1006 = vpack.c.b16 %v996, %v995
    %v1007 = vpack.c.b16 %v998, %v997
    %v1008 = vpack.c.b16 %v1000, %v999
    %1017 = vmatprep.subr.bf16.mxu0 0
    %1018 = vmatpush1.bf16.msra.mxu0 %v1001
    %1019 = vmatprep.subr.bf16.mxu0 0
    %1020 = vmatpush1.bf16.msra.mxu0 %v1002
    %1021 = vmatprep.subr.bf16.mxu0 0
    %1022 = vmatpush1.bf16.msra.mxu0 %v1003
    %1023 = vmatprep.subr.bf16.mxu0 0
    %1024 = vmatpush1.bf16.msra.mxu0 %v1004
    %1025 = vmatprep.subr.bf16.mxu0 0
    %1026 = vmatpush1.bf16.msra.mxu0 %v1005
    %1027 = vmatprep.subr.bf16.mxu0 0
    %1028 = vmatpush1.bf16.msra.mxu0 %v1006
    %1029 = vmatprep.subr.bf16.mxu0 0
    %1030 = vmatpush1.bf16.msra.mxu0 %v1007
    %1031 = vmatprep.subr.bf16.mxu0 0
    %1032 = vmatpush1.bf16.msra.mxu0 %v1008
    %1033 = vmatprep.subr.bf16.mxu0 0
    %1034 = vmatpush1.bf16.msra.mxu0 0
    %1035 = vmatprep.subr.bf16.mxu0 0
    %1036 = vmatpush1.bf16.msra.mxu0 0
    %1037 = vmatprep.subr.bf16.mxu0 0
    %1038 = vmatpush1.bf16.msra.mxu0 0
    %1039 = vmatprep.subr.bf16.mxu0 0
    %1040 = vmatpush1.bf16.msra.mxu0 0
    %1041 = vmatprep.subr.bf16.mxu0 0
    %1042 = vmatpush1.bf16.msra.mxu0 0
    %1043 = vmatprep.subr.bf16.mxu0 0
    %1044 = vmatpush1.bf16.msra.mxu0 0
    %1045 = vmatprep.subr.bf16.mxu0 0
    %1046 = vmatpush1.bf16.msra.mxu0 0
    %1047 = vmatprep.subr.bf16.mxu0 0
    %1048 = vmatpush1.bf16.msra.mxu0 0
    %1049 = vmatprep.mubr.bf16.mxu0 0
    %1050 = vmatmul.mubr.bf16.gmra.mrb[0].mxu0 %v767
    %v1051 = vpop.f32.mrb[0].mxu0
    %v1052 = vadd.f32 0.0, %v1051
    %v1053 = vpop.f32.mrb[0].mxu0
    %v1054 = vpop.f32.mrb[0].mxu0
    %v1055 = vadd.f32 0.0, %v1054
    %v1056 = vpop.f32.mrb[0].mxu0
    %1057 = vdwg.mxu0
    %v1074 = vunpack.c.l.b16 %v937
    %v1075 = vunpack.c.l.b16 %v938
    %v1076 = vunpack.c.l.b16 %v939
    %v1077 = vunpack.c.l.b16 %v940
    %v1078 = vunpack.c.l.b16 %v941
    %v1079 = vunpack.c.l.b16 %v942
    %v1080 = vunpack.c.l.b16 %v943
    %v1081 = vunpack.c.l.b16 %v944
    %v1082 = vunpack.c.l.b16 %v945
    %v1083 = vunpack.c.l.b16 %v946
    %v1084 = vunpack.c.l.b16 %v947
    %v1085 = vunpack.c.l.b16 %v948
    %v1086 = vunpack.c.l.b16 %v949
    %v1087 = vunpack.c.l.b16 %v950
    %v1088 = vunpack.c.l.b16 %v951
    %v1089 = vunpack.c.l.b16 %v952
    %v1090 = vpack.c.b16 %v1075, %v1074
    %v1091 = vpack.c.b16 %v1077, %v1076
    %v1092 = vpack.c.b16 %v1079, %v1078
    %v1093 = vpack.c.b16 %v1081, %v1080
    %v1094 = vpack.c.b16 %v1083, %v1082
    %v1095 = vpack.c.b16 %v1085, %v1084
    %v1096 = vpack.c.b16 %v1087, %v1086
    %v1097 = vpack.c.b16 %v1089, %v1088
    %1106 = vmatprep.subr.bf16.mxu0 0
    %1107 = vmatpush1.bf16.msra.mxu0 %v1090
    %1108 = vmatprep.subr.bf16.mxu0 0
    %1109 = vmatpush1.bf16.msra.mxu0 %v1091
    %1110 = vmatprep.subr.bf16.mxu0 0
    %1111 = vmatpush1.bf16.msra.mxu0 %v1092
    %1112 = vmatprep.subr.bf16.mxu0 0
    %1113 = vmatpush1.bf16.msra.mxu0 %v1093
    %1114 = vmatprep.subr.bf16.mxu0 0
    %1115 = vmatpush1.bf16.msra.mxu0 %v1094
    %1116 = vmatprep.subr.bf16.mxu0 0
    %1117 = vmatpush1.bf16.msra.mxu0 %v1095
    %1118 = vmatprep.subr.bf16.mxu0 0
    %1119 = vmatpush1.bf16.msra.mxu0 %v1096
    %1120 = vmatprep.subr.bf16.mxu0 0
    %1121 = vmatpush1.bf16.msra.mxu0 %v1097
    %1122 = vmatprep.subr.bf16.mxu0 0
    %1123 = vmatpush1.bf16.msra.mxu0 0
    %1124 = vmatprep.subr.bf16.mxu0 0
    %1125 = vmatpush1.bf16.msra.mxu0 0
    %1126 = vmatprep.subr.bf16.mxu0 0
    %1127 = vmatpush1.bf16.msra.mxu0 0
    %1128 = vmatprep.subr.bf16.mxu0 0
    %1129 = vmatpush1.bf16.msra.mxu0 0
    %1130 = vmatprep.subr.bf16.mxu0 0
    %1131 = vmatpush1.bf16.msra.mxu0 0
    %1132 = vmatprep.subr.bf16.mxu0 0
    %1133 = vmatpush1.bf16.msra.mxu0 0
    %1134 = vmatprep.subr.bf16.mxu0 0
    %1135 = vmatpush1.bf16.msra.mxu0 0
    %1136 = vmatprep.subr.bf16.mxu0 0
    %1137 = vmatpush1.bf16.msra.mxu0 0
    %1138 = vmatprep.mubr.bf16.mxu0 0
    %1139 = vmatmul.mubr.bf16.gmra.mrb[0].mxu0 %v498
    %v1140 = vpop.f32.mrb[0].mxu0
    %v1141 = vadd.f32 %v1052, %v1140
    %v1142 = vpop.f32.mrb[0].mxu0
    %v1143 = vpop.f32.mrb[0].mxu0
    %v1144 = vadd.f32 %v1055, %v1143
    %v1145 = vpop.f32.mrb[0].mxu0
    %1146 = vdwg.mxu0
    %v1147 = vld [vmem:[#allocation15] sm:$0xf]
    %v1148 = vld [vmem:[#allocation15 + $0x4] sm:$0xf]
    %v1149 = vld [vmem:[#allocation15 + $0x8] sm:$0xf]
    %v1150 = vld [vmem:[#allocation15 + $0xc] sm:$0xf]
    %v1151 = vld [vmem:[#allocation15 + $0x10] sm:$0xf]
    %v1152 = vld [vmem:[#allocation15 + $0x14] sm:$0xf]
    %v1153 = vld [vmem:[#allocation15 + $0x18] sm:$0xf]
    %v1154 = vld [vmem:[#allocation15 + $0x1c] sm:$0xf]
    %v1155 = vld [vmem:[#allocation15 + $0x20] sm:$0xf]
    %v1156 = vld [vmem:[#allocation15 + $0x24] sm:$0xf]
    %v1157 = vld [vmem:[#allocation15 + $0x28] sm:$0xf]
    %v1158 = vld [vmem:[#allocation15 + $0x2c] sm:$0xf]
    %v1159 = vld [vmem:[#allocation15 + $0x30] sm:$0xf]
    %v1160 = vld [vmem:[#allocation15 + $0x34] sm:$0xf]
    %v1161 = vld [vmem:[#allocation15 + $0x38] sm:$0xf]
    %v1162 = vld [vmem:[#allocation15 + $0x3c] sm:$0xf]
    %v1179 = vunpack.c.l.b16 %v1147
    %v1180 = vunpack.c.l.b16 %v1148
    %v1181 = vunpack.c.l.b16 %v1149
    %v1182 = vunpack.c.l.b16 %v1150
    %v1183 = vunpack.c.l.b16 %v1151
    %v1184 = vunpack.c.l.b16 %v1152
    %v1185 = vunpack.c.l.b16 %v1153
    %v1186 = vunpack.c.l.b16 %v1154
    %v1187 = vunpack.c.l.b16 %v1155
    %v1188 = vunpack.c.l.b16 %v1156
    %v1189 = vunpack.c.l.b16 %v1157
    %v1190 = vunpack.c.l.b16 %v1158
    %v1191 = vunpack.c.l.b16 %v1159
    %v1192 = vunpack.c.l.b16 %v1160
    %v1193 = vunpack.c.l.b16 %v1161
    %v1194 = vunpack.c.l.b16 %v1162
    %v1195 = vpack.c.b16 %v1180, %v1179
    %v1196 = vpack.c.b16 %v1182, %v1181
    %v1197 = vpack.c.b16 %v1184, %v1183
    %v1198 = vpack.c.b16 %v1186, %v1185
    %v1199 = vpack.c.b16 %v1188, %v1187
    %v1200 = vpack.c.b16 %v1190, %v1189
    %v1201 = vpack.c.b16 %v1192, %v1191
    %v1202 = vpack.c.b16 %v1194, %v1193
    %1211 = vmatprep.subr.bf16.mxu0 0
    %1212 = vmatpush1.bf16.msra.mxu0 %v1195
    %1213 = vmatprep.subr.bf16.mxu0 0
    %1214 = vmatpush1.bf16.msra.mxu0 %v1196
    %1215 = vmatprep.subr.bf16.mxu0 0
    %1216 = vmatpush1.bf16.msra.mxu0 %v1197
    %1217 = vmatprep.subr.bf16.mxu0 0
    %1218 = vmatpush1.bf16.msra.mxu0 %v1198
    %1219 = vmatprep.subr.bf16.mxu0 0
    %1220 = vmatpush1.bf16.msra.mxu0 %v1199
    %1221 = vmatprep.subr.bf16.mxu0 0
    %1222 = vmatpush1.bf16.msra.mxu0 %v1200
    %1223 = vmatprep.subr.bf16.mxu0 0
    %1224 = vmatpush1.bf16.msra.mxu0 %v1201
    %1225 = vmatprep.subr.bf16.mxu0 0
    %1226 = vmatpush1.bf16.msra.mxu0 %v1202
    %1227 = vmatprep.subr.bf16.mxu0 0
    %1228 = vmatpush1.bf16.msra.mxu0 0
    %1229 = vmatprep.subr.bf16.mxu0 0
    %1230 = vmatpush1.bf16.msra.mxu0 0
    %1231 = vmatprep.subr.bf16.mxu0 0
    %1232 = vmatpush1.bf16.msra.mxu0 0
    %1233 = vmatprep.subr.bf16.mxu0 0
    %1234 = vmatpush1.bf16.msra.mxu0 0
    %1235 = vmatprep.subr.bf16.mxu0 0
    %1236 = vmatpush1.bf16.msra.mxu0 0
    %1237 = vmatprep.subr.bf16.mxu0 0
    %1238 = vmatpush1.bf16.msra.mxu0 0
    %1239 = vmatprep.subr.bf16.mxu0 0
    %1240 = vmatpush1.bf16.msra.mxu0 0
    %1241 = vmatprep.subr.bf16.mxu0 0
    %1242 = vmatpush1.bf16.msra.mxu0 0
    %1243 = vmatprep.mubr.bf16.mxu0 0
    %1244 = vmatmul.mubr.bf16.gmra.mrb[0].mxu0 %v936
    %v1245 = vpop.f32.mrb[0].mxu0
    %v1246 = vadd.f32 0.0, %v1245
    %v1247 = vpop.f32.mrb[0].mxu0
    %v1248 = vpop.f32.mrb[0].mxu0
    %v1249 = vadd.f32 0.0, %v1248
    %v1250 = vpop.f32.mrb[0].mxu0
    %1251 = vdwg.mxu0
    %v1252 = vadd.f32 %v1141, %v1246
    %v1253 = vadd.f32 %v1144, %v1249
    %v1254 = vpack.c.bf16 %v1253, %v1252
    %v1255 = vld [vmem:[%s13] sm:$0x1]
    %v1257 = vlaneseq
    %v1258 = vshrl.u32 %v1257, 7
    %v1259 = vsub.s32 0, %v1258
    %v1260 = vrot.slane %v1255, %v1259
    %1262 = vmatprep.subr.bf16.mxu0 0
    %1263 = vmatpush1.bf16.msra.mxu0 %v1254
    %1264 = vmatprep.subr.bf16.mxu0 0
    %1265 = vmatpush1.bf16.msra.mxu0 0
    %1266 = vmatprep.subr.bf16.mxu0 0
    %1267 = vmatpush1.bf16.msra.mxu0 0
    %1268 = vmatprep.subr.bf16.mxu0 0
    %1269 = vmatpush1.bf16.msra.mxu0 0
    %1270 = vmatprep.subr.bf16.mxu0 0
    %1271 = vmatpush1.bf16.msra.mxu0 0
    %1272 = vmatprep.subr.bf16.mxu0 0
    %1273 = vmatpush1.bf16.msra.mxu0 0
    %1274 = vmatprep.subr.bf16.mxu0 0
    %1275 = vmatpush1.bf16.msra.mxu0 0
    %1276 = vmatprep.subr.bf16.mxu0 0
    %1277 = vmatpush1.bf16.msra.mxu0 0
    %1278 = vmatprep.subr.bf16.mxu0 0
    %1279 = vmatpush1.bf16.msra.mxu0 0
    %1280 = vmatprep.subr.bf16.mxu0 0
    %1281 = vmatpush1.bf16.msra.mxu0 0
    %1282 = vmatprep.subr.bf16.mxu0 0
    %1283 = vmatpush1.bf16.msra.mxu0 0
    %1284 = vmatprep.subr.bf16.mxu0 0
    %1285 = vmatpush1.bf16.msra.mxu0 0
    %1286 = vmatprep.subr.bf16.mxu0 0
    %1287 = vmatpush1.bf16.msra.mxu0 0
    %1288 = vmatprep.subr.bf16.mxu0 0
    %1289 = vmatpush1.bf16.msra.mxu0 0
    %1290 = vmatprep.subr.bf16.mxu0 0
    %1291 = vmatpush1.bf16.msra.mxu0 0
    %1292 = vmatprep.subr.bf16.mxu0 0
    %1293 = vmatpush1.bf16.msra.mxu0 0
    %1294 = vmatprep.mubr.bf16.mxu0 0
    %1295 = vmatmul.mubr.bf16.gmra.mrb[0].mxu0 %v187
    %v1296 = vpop.f32.mrb[0].mxu0
    %v1297 = vadd.f32 %v1260, %v1296
    %v1298 = vpop.f32.mrb[0].mxu0
    %v1299 = vpop.f32.mrb[0].mxu0
    %v1300 = vadd.f32 %v1260, %v1299
    %v1301 = vpop.f32.mrb[0].mxu0
    %1302 = vdwg.mxu0
    %1303 = vst [vmem:[%s14] sm:$0xff] %v1297
    %1304 = vst [vmem:[%s14 + $0x8] sm:$0xff] %v1300
    // Predicated region
    $region94: #{incep_gcn_block_apply.1} parent=1 // pred_check
      _
    $region95: #{incep_gcn_block_apply.1} parent=1 // pred_check_branch
      %1306 = sbr.rel (0) target = $region97
    $region96: #{incep_gcn_block_apply.1} parent=1 // pred_region
      _
    $region97: #{incep_gcn_block_apply.1} parent=1 // pred_fallthru
      _
    // Predicated region
    $region98: #{incep_gcn_block_apply.1} parent=1 // pred_check
      _
    $region99: #{incep_gcn_block_apply.1} parent=1 // pred_check_branch
      %1308 = sbr.rel (0) target = $region101
    $region100: #{incep_gcn_block_apply.1} parent=1 // pred_region
      _
    $region101: #{incep_gcn_block_apply.1} parent=1 // pred_fallthru
      _
    %1309 = vsyncpa [#allocation3], 1
    %1310 = vsyncpa [#allocation5], 1
    %1311 = vsyncpa [#allocation8], 1
    %1312 = vsyncpa [#allocation11], 1
    %1313 = vsyncpa [#allocation14], 1

</llo_original>
